<compile_context>
chip_gen: v7x
topology: tpu7x:2x2x1
jax: 0.10.0
libtpu: 0.0.40
codegen_flags: <defaults>
</compile_context>

<pallas_src>
import jax
import jax.numpy as jnp
from jax.experimental import pallas as pl
from jax.experimental.pallas import tpu as pltpu


def _vmem_capacity_bytes():
    """Per-core VMEM capacity; conservative 64 MiB (v7x) fallback if the query fails."""
    try:
        info = pltpu.get_tpu_info()
        cap = getattr(info, "vmem_capacity_bytes", None)
        if cap:
            return int(cap)
    except Exception:
        pass
    return 64 * 1024 * 1024


def _min_grid_steps():
    """v5e has a single TensorCore -> 2 pipelined steps suffice; v6e/v7x prefer >=4."""
    try:
        kind = jax.devices()[0].device_kind.lower()
    except Exception:
        return 4
    if "v5 lite" in kind or "v5e" in kind or "v5lite" in kind:
        return 2
    return 4


def _pick_hs(height, width, lane_target=128, lane_max=256):
    """Rows folded into the lane axis so each block row is lane-dense (>=128 lanes)."""
    divs = [d for d in range(1, height + 1) if height % d == 0]
    exact = [d for d in divs if (d * width) % lane_target == 0 and d * width <= lane_max]
    if exact:
        return min(exact)
    geq = [d for d in divs if lane_target <= d * width <= lane_max]
    if geq:
        return min(geq)
    small = [d for d in divs if d * width <= lane_max]
    return max(small) if small else 1


def _pick_tile_h(batch, hprime, sub_mult, fits, min_steps):
    """Largest folded-H tile that fits the VMEM budget; prefer >= min_steps grid steps."""
    cands = [d for d in range(1, hprime + 1)
             if hprime % d == 0 and (d % sub_mult == 0 or d == hprime)]
    ok = [d for d in cands if fits(d)]
    if not ok:
        return min(cands)
    pref = [d for d in ok if batch * (hprime // d) >= min_steps]
    return max(pref) if pref else max(ok)


def pixel_shuffle_v2_forward(x_nchw, weight, bn_gamma, bn_beta, bn_mean, bn_var,
                             *, eps=1e-5, io_dtype=jnp.float32,
                             tile_h=None, vmem_budget_bytes=None):
    """Forward pass matching PixelShuffle_v2 (BatchNorm evaluated in inference mode).

    x_nchw : (B, Cin, H, W) float32
    weight : (Cout*4, Cin)  float32   -- Conv2d(1x1, bias=False) weight, squeezed
    io_dtype : activation I/O dtype for the kernel (f32 = exact parity, bf16 = half HBM bytes;
               accumulation is f32 either way).
    returns: (B, Cout, 2H, 2W) io_dtype   (the module hard-codes nn.PixelShuffle(2))
    """
    B, Cin, H, W = x_nchw.shape
    Cout4 = weight.shape[0]
    R = 2                                   # nn.PixelShuffle(2) is hard-coded in the module
    assert Cout4 % (R * R) == 0, "conv output channels must be divisible by 4"
    assert weight.shape == (Cout4, Cin)
    Cout = Cout4 // (R * R)

    f32 = jnp.float32
    io_bytes = jnp.dtype(io_dtype).itemsize
    sub_mult = 8 if io_bytes == 4 else 16   # bf16 packs 2 rows per sublane

    # ---- fold BatchNorm (running stats) into the conv weight / bias.
    inv_std = 1.0 / jnp.sqrt(bn_var.astype(f32) + eps)
    scale = bn_gamma.astype(f32) * inv_std                        # (Cout4,)
    w_fold = weight.astype(f32) * scale[:, None]                  # (Cout4, Cin)
    b_fold = bn_beta.astype(f32) - bn_mean.astype(f32) * scale    # (Cout4,)

    # ---- lane folding: each block row carries Hs spatial rows -> lane-dense loads/stores.
    Hs = _pick_hs(H, W)
    Hp = H // Hs                           # folded row count
    L = Hs * W                             # input lane width per folded row
    L4 = R * R * L                         # output lane width per folded row (pixel-shuffled)

    # ---- pixel-shuffle-ordered, lane-folded weight / bias rows.
    # lane t = h_sub*4W + r1*2W + 2*w + r2  (h_sub: folded row, r1/r2: row/col sub-pixel)
    w4 = jnp.transpose(w_fold.reshape(Cout, R, R, Cin), (0, 3, 1, 2))      # (co, c, r1, r2)
    wsel = jnp.broadcast_to(w4[:, :, :, None, :],
                            (Cout, Cin, R, W, R)).reshape(Cout * Cin, R * R * W)
    wsel = jnp.tile(wsel, (1, Hs)).astype(f32)                             # (Cout*Cin, L4)
    b4 = b_fold.reshape(Cout, R, R)                                        # (co, r1, r2)
    bsel = jnp.broadcast_to(b4[:, :, None, :], (Cout, R, W, R)).reshape(Cout, R * R * W)
    bsel = jnp.tile(bsel, (1, Hs)).astype(f32)                             # (Cout, L4)

    # ---- block-diagonal lane-duplication matrix: (x_row @ dup)[t] == x_row[src(t)]
    # src(t) = (t // 4W)*W + (t % 2W)//2 ; exact 0/1 values, io dtype so bf16 rides bf16 MXU.
    t_idx = jnp.arange(L4)
    src = (t_idx // (R * R * W)) * W + ((t_idx % (R * W)) // R)
    dup = (src[None, :] == jnp.arange(L)[:, None]).astype(io_dtype)        # (L, L4)

    # ---- VMEM sizing (double-buffered I/O blocks + constants + in-kernel intermediates).
    cap = _vmem_capacity_bytes()
    if vmem_budget_bytes is None:
        vmem_budget_bytes = min(48 << 20, max(24 << 20, cap * 3 // 8))
    const_bytes = 2 * (L * L4 * io_bytes + (Cout * Cin + Cout) * L4 * 4)

    def block_bytes(th):
        blk_io = 2 * (Cin * th * L + Cout * th * L4) * io_bytes   # double-buffered in/out
        inter = (Cin + 2) * th * L4 * 4                           # xd (f32) + acc/y headroom
        return blk_io + inter

    if tile_h is None:
        TH = _pick_tile_h(B, Hp, sub_mult,
                          lambda th: block_bytes(th) + const_bytes <= vmem_budget_bytes,
                          _min_grid_steps())
    else:
        TH = tile_h
    assert Hp % TH == 0 and (TH % sub_mult == 0 or TH == Hp), f"bad tile_h={TH} for H'={Hp}"

    vmem_limit = int(min(max(block_bytes(TH) + const_bytes + (4 << 20), 16 << 20),
                         cap * 3 // 4))

    # Free row-major fold of (H, W) -> (H/Hs, Hs*W): no transpose, no extra HBM pass.
    x_in = x_nchw.astype(io_dtype).reshape(B, Cin, Hp, L)

    def kernel(x_ref, dup_ref, wsel_ref, bsel_ref, o_ref):
        # x_ref:    (1, Cin, TH, L)      NCHW tile, Hs rows folded into 128+-wide lanes
        # dup_ref:  (L, L4)              constant block-diagonal lane-duplication matrix
        # wsel_ref: (Cout*Cin, L4)       BN-folded, pixel-shuffle-ordered weight rows
        # bsel_ref: (Cout, L4)           BN-folded, pixel-shuffle-ordered bias rows
        # o_ref:    (1, Cout, TH, L4)    already pixel-shuffled output rows (lane-dense store)
        d = dup_ref[...]
        wsel_v = wsel_ref[...]
        bsel_v = bsel_ref[...]
        # Place every input pixel at its 4 shuffled lane positions (MXU, K = L >= 128).
        xd = [jnp.dot(x_ref[0, c, :, :], d, preferred_element_type=jnp.float32)
              for c in range(Cin)]                                     # each (TH, L4), f32
        # 1x1 conv (BN folded) + bias + ReLU on the VPU; full-width (TH, L4) stores.
        for co in range(Cout):
            acc = bsel_v[co:co + 1, :] + wsel_v[co * Cin:co * Cin + 1, :] * xd[0]
            for c in range(1, Cin):
                acc = acc + wsel_v[co * Cin + c:co * Cin + c + 1, :] * xd[c]
            o_ref[0, co, :, :] = jnp.maximum(acc, 0.0).astype(o_ref.dtype)

    bytes_accessed = ((B * Cin * H * W + B * Cout4 * H * W) * io_bytes
                      + L * L4 * io_bytes + (Cout * Cin + Cout) * L4 * 4)
    flops = 2 * B * Cin * Hp * L * L4 + 2 * B * Cout * Hp * L4 * Cin

    out = pl.pallas_call(
        kernel,
        out_shape=jax.ShapeDtypeStruct((B, Cout, Hp, L4), io_dtype),
        grid_spec=pltpu.PrefetchScalarGridSpec(
            num_scalar_prefetch=0,
            grid=(B, Hp // TH),
            in_specs=[
                pl.BlockSpec((1, Cin, TH, L), lambda b, h: (b, 0, h, 0)),
                pl.BlockSpec((L, L4), lambda b, h: (0, 0)),
                pl.BlockSpec((Cout * Cin, L4), lambda b, h: (0, 0)),
                pl.BlockSpec((Cout, L4), lambda b, h: (0, 0)),
            ],
            out_specs=pl.BlockSpec((1, Cout, TH, L4), lambda b, h: (b, 0, h, 0)),
        ),
        compiler_params=pltpu.CompilerParams(
            dimension_semantics=("parallel", "parallel"),
            vmem_limit_bytes=vmem_limit,
        ),
        cost_estimate=pl.CostEstimate(flops=int(flops), transcendentals=0,
                                      bytes_accessed=int(bytes_accessed)),
    )(x_in, dup, wsel, bsel)

    # (B, Cout, H/Hs, Hs*4W) in row-major order is identical to (B, Cout, H, 2, W, 2);
    # merging (H,2)->2H and (W,2)->2W is a pure reshape (no transpose, no extra HBM pass)
    # and yields exactly the PixelShuffle(2) result.
    return out.reshape(B, Cout, H * R, W * R)


def _reference(x_nchw, weight, bn_gamma, bn_beta, bn_mean, bn_var, eps=1e-5):
    """Pure-JAX reference (elementwise conv so its f32 precision is unambiguous)."""
    B, Cin, H, W = x_nchw.shape
    Cout4 = weight.shape[0]
    R = 2
    Cout = Cout4 // (R * R)
    y = jnp.sum(x_nchw[:, None, :, :, :] * weight[None, :, :, None, None], axis=2)  # (B,Cout4,H,W)
    sc = (bn_gamma / jnp.sqrt(bn_var + eps)).reshape(1, Cout4, 1, 1)
    bi = (bn_beta - bn_mean * bn_gamma / jnp.sqrt(bn_var + eps)).reshape(1, Cout4, 1, 1)
    y = jnp.maximum(y * sc + bi, 0.0)
    y = y.reshape(B, Cout, R, R, H, W)
    y = jnp.transpose(y, (0, 1, 4, 2, 5, 3)).reshape(B, Cout, H * R, W * R)
    return y


if __name__ == "__main__":
    key = jax.random.PRNGKey(0)
    B, Cin, H, W = 2, 4, 16, 16
    out_channels, scale = 4, 2
    Cout4 = out_channels * scale * scale  # 16

    k1, k2, k3, k4, k5, k6 = jax.random.split(key, 6)
    x = jax.random.normal(k1, (B, Cin, H, W), dtype=jnp.float32)
    # Conv2d(in, out*scale*scale, kernel_size=1, bias=False) weight, squeezed to (Cout4, Cin)
    weight = jax.random.normal(k2, (Cout4, Cin), dtype=jnp.float32) * 0.1
    bn_gamma = 1.0 + 0.1 * jax.random.normal(k3, (Cout4,), dtype=jnp.float32)
    bn_beta = 0.1 * jax.random.normal(k4, (Cout4,), dtype=jnp.float32)
    bn_mean = 0.05 * jax.random.normal(k5, (Cout4,), dtype=jnp.float32)
    bn_var = 1.0 + 0.1 * jax.random.uniform(k6, (Cout4,), dtype=jnp.float32)

    ref = _reference(x, weight, bn_gamma, bn_beta, bn_mean, bn_var)

    # Default f32 activation I/O: exact parity with the PyTorch module's dtype.
    out = jax.block_until_ready(
        pixel_shuffle_v2_forward(x, weight, bn_gamma, bn_beta, bn_mean, bn_var))
    assert out.shape == (B, out_channels, H * 2, W * 2), out.shape
    err = float(jnp.max(jnp.abs(out - ref)))
    assert jnp.allclose(out, ref, atol=1e-3, rtol=1e-3), err

    # bf16 activation I/O (half HBM traffic; accumulation stays f32) — looser tolerance.
    out_bf16 = pixel_shuffle_v2_forward(x, weight, bn_gamma, bn_beta, bn_mean, bn_var,
                                        io_dtype=jnp.bfloat16)
    out_bf16 = jax.block_until_ready(out_bf16).astype(jnp.float32)
    err_bf16 = float(jnp.max(jnp.abs(out_bf16 - ref)))
    assert jnp.allclose(out_bf16, ref, atol=3e-2, rtol=3e-2), err_bf16

    print("KERNEL_OK")
</pallas_src>

<mosaic_0001>
module attributes {stable_mosaic.version = 11 : i64} {
  func.func @kernel(%arg0: i32, %arg1: i32, %arg2: memref<1x4x2x128xf32, #tpu.memory_space<vmem>>, %arg3: memref<128x512xf32, #tpu.memory_space<vmem>>, %arg4: memref<16x512xf32, #tpu.memory_space<vmem>>, %arg5: memref<4x512xf32, #tpu.memory_space<vmem>>, %arg6: memref<1x4x2x512xf32, #tpu.memory_space<vmem>>) attributes {dimension_semantics = [#tpu.dimension_semantics<parallel>, #tpu.dimension_semantics<parallel>], iteration_bounds = array<i64: 2, 1>, scalar_prefetch = 0 : i64, scratch_operands = 0 : i64, tpu.core_type = #tpu.core_type<tc>, window_params = [{transform_indices = @transform_0, window_bounds = array<i64: 1, 4, 2, 128>}, {pipeline_mode = #tpu.pipeline_mode<synchronous>, transform_indices = @transform_1, window_bounds = array<i64: 128, 512>}, {pipeline_mode = #tpu.pipeline_mode<synchronous>, transform_indices = @transform_2, window_bounds = array<i64: 16, 512>}, {pipeline_mode = #tpu.pipeline_mode<synchronous>, transform_indices = @transform_3, window_bounds = array<i64: 4, 512>}, {transform_indices = @transform_4, window_bounds = array<i64: 1, 4, 2, 512>}]} {
    %c0 = arith.constant 0 : index
    %c0_0 = arith.constant 0 : index
    %0 = vector.load %arg3[%c0, %c0_0] : memref<128x512xf32, #tpu.memory_space<vmem>>, vector<128x512xf32>
    %c0_1 = arith.constant 0 : index
    %c0_2 = arith.constant 0 : index
    %1 = vector.load %arg4[%c0_1, %c0_2] : memref<16x512xf32, #tpu.memory_space<vmem>>, vector<16x512xf32>
    %c0_3 = arith.constant 0 : index
    %c0_4 = arith.constant 0 : index
    %2 = vector.load %arg5[%c0_3, %c0_4] : memref<4x512xf32, #tpu.memory_space<vmem>>, vector<4x512xf32>
    %c0_5 = arith.constant 0 : index
    %c0_6 = arith.constant 0 : index
    %c0_7 = arith.constant 0 : index
    %c0_8 = arith.constant 0 : index
    %3 = vector.load %arg2[%c0_5, %c0_6, %c0_7, %c0_8] : memref<1x4x2x128xf32, #tpu.memory_space<vmem>>, vector<1x1x2x128xf32>
    %4 = vector.shape_cast %3 : vector<1x1x2x128xf32> to vector<2x128xf32>
    %cst = arith.constant dense<0.000000e+00> : vector<2x512xf32>
    %5 = tpu.matmul %4, %0, %cst {dimension_numbers = #tpu.dot_dimension_numbers<[1], [0], [0], [1], [0, 0, 1, 1], [], []>} : vector<2x128xf32>, vector<128x512xf32>, vector<2x512xf32> -> vector<2x512xf32>
    %c0_9 = arith.constant 0 : index
    %c1 = arith.constant 1 : index
    %c0_10 = arith.constant 0 : index
    %c0_11 = arith.constant 0 : index
    %6 = vector.load %arg2[%c0_9, %c1, %c0_10, %c0_11] : memref<1x4x2x128xf32, #tpu.memory_space<vmem>>, vector<1x1x2x128xf32>
    %7 = vector.shape_cast %6 : vector<1x1x2x128xf32> to vector<2x128xf32>
    %cst_12 = arith.constant dense<0.000000e+00> : vector<2x512xf32>
    %8 = tpu.matmul %7, %0, %cst_12 {dimension_numbers = #tpu.dot_dimension_numbers<[1], [0], [0], [1], [0, 0, 1, 1], [], []>} : vector<2x128xf32>, vector<128x512xf32>, vector<2x512xf32> -> vector<2x512xf32>
    %c0_13 = arith.constant 0 : index
    %c2 = arith.constant 2 : index
    %c0_14 = arith.constant 0 : index
    %c0_15 = arith.constant 0 : index
    %9 = vector.load %arg2[%c0_13, %c2, %c0_14, %c0_15] : memref<1x4x2x128xf32, #tpu.memory_space<vmem>>, vector<1x1x2x128xf32>
    %10 = vector.shape_cast %9 : vector<1x1x2x128xf32> to vector<2x128xf32>
    %cst_16 = arith.constant dense<0.000000e+00> : vector<2x512xf32>
    %11 = tpu.matmul %10, %0, %cst_16 {dimension_numbers = #tpu.dot_dimension_numbers<[1], [0], [0], [1], [0, 0, 1, 1], [], []>} : vector<2x128xf32>, vector<128x512xf32>, vector<2x512xf32> -> vector<2x512xf32>
    %c0_17 = arith.constant 0 : index
    %c3 = arith.constant 3 : index
    %c0_18 = arith.constant 0 : index
    %c0_19 = arith.constant 0 : index
    %12 = vector.load %arg2[%c0_17, %c3, %c0_18, %c0_19] : memref<1x4x2x128xf32, #tpu.memory_space<vmem>>, vector<1x1x2x128xf32>
    %13 = vector.shape_cast %12 : vector<1x1x2x128xf32> to vector<2x128xf32>
    %cst_20 = arith.constant dense<0.000000e+00> : vector<2x512xf32>
    %14 = tpu.matmul %13, %0, %cst_20 {dimension_numbers = #tpu.dot_dimension_numbers<[1], [0], [0], [1], [0, 0, 1, 1], [], []>} : vector<2x128xf32>, vector<128x512xf32>, vector<2x512xf32> -> vector<2x512xf32>
    %15 = vector.extract_strided_slice %2 {offsets = [0, 0], sizes = [1, 512], strides = [1, 1]} : vector<4x512xf32> to vector<1x512xf32>
    %16 = vector.extract_strided_slice %1 {offsets = [0, 0], sizes = [1, 512], strides = [1, 1]} : vector<16x512xf32> to vector<1x512xf32>
    %17 = vector.broadcast %16 : vector<1x512xf32> to vector<2x512xf32>
    %18 = arith.mulf %17, %5 : vector<2x512xf32>
    %19 = vector.broadcast %15 : vector<1x512xf32> to vector<2x512xf32>
    %20 = arith.addf %19, %18 : vector<2x512xf32>
    %21 = vector.extract_strided_slice %1 {offsets = [1, 0], sizes = [1, 512], strides = [1, 1]} : vector<16x512xf32> to vector<1x512xf32>
    %22 = vector.broadcast %21 : vector<1x512xf32> to vector<2x512xf32>
    %23 = arith.mulf %22, %8 : vector<2x512xf32>
    %24 = arith.addf %20, %23 : vector<2x512xf32>
    %25 = vector.extract_strided_slice %1 {offsets = [2, 0], sizes = [1, 512], strides = [1, 1]} : vector<16x512xf32> to vector<1x512xf32>
    %26 = vector.broadcast %25 : vector<1x512xf32> to vector<2x512xf32>
    %27 = arith.mulf %26, %11 : vector<2x512xf32>
    %28 = arith.addf %24, %27 : vector<2x512xf32>
    %29 = vector.extract_strided_slice %1 {offsets = [3, 0], sizes = [1, 512], strides = [1, 1]} : vector<16x512xf32> to vector<1x512xf32>
    %30 = vector.broadcast %29 : vector<1x512xf32> to vector<2x512xf32>
    %31 = arith.mulf %30, %14 : vector<2x512xf32>
    %32 = arith.addf %28, %31 : vector<2x512xf32>
    %cst_21 = arith.constant 0.000000e+00 : f32
    %33 = vector.broadcast %cst_21 : f32 to vector<2x512xf32>
    %34 = arith.maximumf %32, %33 : vector<2x512xf32>
    %c0_22 = arith.constant 0 : index
    %c0_23 = arith.constant 0 : index
    %c0_24 = arith.constant 0 : index
    %c0_25 = arith.constant 0 : index
    %35 = vector.load %arg6[%c0_22, %c0_23, %c0_24, %c0_25] : memref<1x4x2x512xf32, #tpu.memory_space<vmem>>, vector<1x1x2x512xf32>
    %36 = vector.shape_cast %35 : vector<1x1x2x512xf32> to vector<2x512xf32>
    %37 = vector.shape_cast %34 : vector<2x512xf32> to vector<1x1x2x512xf32>
    tpu.vector_store %arg6[%c0_22, %c0_23, %c0_24, %c0_25], %37 {strides = array<i32>} : memref<1x4x2x512xf32, #tpu.memory_space<vmem>>, vector<1x1x2x512xf32>,
    %38 = vector.extract_strided_slice %2 {offsets = [1, 0], sizes = [1, 512], strides = [1, 1]} : vector<4x512xf32> to vector<1x512xf32>
    %39 = vector.extract_strided_slice %1 {offsets = [4, 0], sizes = [1, 512], strides = [1, 1]} : vector<16x512xf32> to vector<1x512xf32>
    %40 = vector.broadcast %39 : vector<1x512xf32> to vector<2x512xf32>
    %41 = arith.mulf %40, %5 : vector<2x512xf32>
    %42 = vector.broadcast %38 : vector<1x512xf32> to vector<2x512xf32>
    %43 = arith.addf %42, %41 : vector<2x512xf32>
    %44 = vector.extract_strided_slice %1 {offsets = [5, 0], sizes = [1, 512], strides = [1, 1]} : vector<16x512xf32> to vector<1x512xf32>
    %45 = vector.broadcast %44 : vector<1x512xf32> to vector<2x512xf32>
    %46 = arith.mulf %45, %8 : vector<2x512xf32>
    %47 = arith.addf %43, %46 : vector<2x512xf32>
    %48 = vector.extract_strided_slice %1 {offsets = [6, 0], sizes = [1, 512], strides = [1, 1]} : vector<16x512xf32> to vector<1x512xf32>
    %49 = vector.broadcast %48 : vector<1x512xf32> to vector<2x512xf32>
    %50 = arith.mulf %49, %11 : vector<2x512xf32>
    %51 = arith.addf %47, %50 : vector<2x512xf32>
    %52 = vector.extract_strided_slice %1 {offsets = [7, 0], sizes = [1, 512], strides = [1, 1]} : vector<16x512xf32> to vector<1x512xf32>
    %53 = vector.broadcast %52 : vector<1x512xf32> to vector<2x512xf32>
    %54 = arith.mulf %53, %14 : vector<2x512xf32>
    %55 = arith.addf %51, %54 : vector<2x512xf32>
    %cst_26 = arith.constant 0.000000e+00 : f32
    %56 = vector.broadcast %cst_26 : f32 to vector<2x512xf32>
    %57 = arith.maximumf %55, %56 : vector<2x512xf32>
    %c0_27 = arith.constant 0 : index
    %c1_28 = arith.constant 1 : index
    %c0_29 = arith.constant 0 : index
    %c0_30 = arith.constant 0 : index
    %58 = vector.load %arg6[%c0_27, %c1_28, %c0_29, %c0_30] : memref<1x4x2x512xf32, #tpu.memory_space<vmem>>, vector<1x1x2x512xf32>
    %59 = vector.shape_cast %58 : vector<1x1x2x512xf32> to vector<2x512xf32>
    %60 = vector.shape_cast %57 : vector<2x512xf32> to vector<1x1x2x512xf32>
    tpu.vector_store %arg6[%c0_27, %c1_28, %c0_29, %c0_30], %60 {strides = array<i32>} : memref<1x4x2x512xf32, #tpu.memory_space<vmem>>, vector<1x1x2x512xf32>,
    %61 = vector.extract_strided_slice %2 {offsets = [2, 0], sizes = [1, 512], strides = [1, 1]} : vector<4x512xf32> to vector<1x512xf32>
    %62 = vector.extract_strided_slice %1 {offsets = [8, 0], sizes = [1, 512], strides = [1, 1]} : vector<16x512xf32> to vector<1x512xf32>
    %63 = vector.broadcast %62 : vector<1x512xf32> to vector<2x512xf32>
    %64 = arith.mulf %63, %5 : vector<2x512xf32>
    %65 = vector.broadcast %61 : vector<1x512xf32> to vector<2x512xf32>
    %66 = arith.addf %65, %64 : vector<2x512xf32>
    %67 = vector.extract_strided_slice %1 {offsets = [9, 0], sizes = [1, 512], strides = [1, 1]} : vector<16x512xf32> to vector<1x512xf32>
    %68 = vector.broadcast %67 : vector<1x512xf32> to vector<2x512xf32>
    %69 = arith.mulf %68, %8 : vector<2x512xf32>
    %70 = arith.addf %66, %69 : vector<2x512xf32>
    %71 = vector.extract_strided_slice %1 {offsets = [10, 0], sizes = [1, 512], strides = [1, 1]} : vector<16x512xf32> to vector<1x512xf32>
    %72 = vector.broadcast %71 : vector<1x512xf32> to vector<2x512xf32>
    %73 = arith.mulf %72, %11 : vector<2x512xf32>
    %74 = arith.addf %70, %73 : vector<2x512xf32>
    %75 = vector.extract_strided_slice %1 {offsets = [11, 0], sizes = [1, 512], strides = [1, 1]} : vector<16x512xf32> to vector<1x512xf32>
    %76 = vector.broadcast %75 : vector<1x512xf32> to vector<2x512xf32>
    %77 = arith.mulf %76, %14 : vector<2x512xf32>
    %78 = arith.addf %74, %77 : vector<2x512xf32>
    %cst_31 = arith.constant 0.000000e+00 : f32
    %79 = vector.broadcast %cst_31 : f32 to vector<2x512xf32>
    %80 = arith.maximumf %78, %79 : vector<2x512xf32>
    %c0_32 = arith.constant 0 : index
    %c2_33 = arith.constant 2 : index
    %c0_34 = arith.constant 0 : index
    %c0_35 = arith.constant 0 : index
    %81 = vector.load %arg6[%c0_32, %c2_33, %c0_34, %c0_35] : memref<1x4x2x512xf32, #tpu.memory_space<vmem>>, vector<1x1x2x512xf32>
    %82 = vector.shape_cast %81 : vector<1x1x2x512xf32> to vector<2x512xf32>
    %83 = vector.shape_cast %80 : vector<2x512xf32> to vector<1x1x2x512xf32>
    tpu.vector_store %arg6[%c0_32, %c2_33, %c0_34, %c0_35], %83 {strides = array<i32>} : memref<1x4x2x512xf32, #tpu.memory_space<vmem>>, vector<1x1x2x512xf32>,
    %84 = vector.extract_strided_slice %2 {offsets = [3, 0], sizes = [1, 512], strides = [1, 1]} : vector<4x512xf32> to vector<1x512xf32>
    %85 = vector.extract_strided_slice %1 {offsets = [12, 0], sizes = [1, 512], strides = [1, 1]} : vector<16x512xf32> to vector<1x512xf32>
    %86 = vector.broadcast %85 : vector<1x512xf32> to vector<2x512xf32>
    %87 = arith.mulf %86, %5 : vector<2x512xf32>
    %88 = vector.broadcast %84 : vector<1x512xf32> to vector<2x512xf32>
    %89 = arith.addf %88, %87 : vector<2x512xf32>
    %90 = vector.extract_strided_slice %1 {offsets = [13, 0], sizes = [1, 512], strides = [1, 1]} : vector<16x512xf32> to vector<1x512xf32>
    %91 = vector.broadcast %90 : vector<1x512xf32> to vector<2x512xf32>
    %92 = arith.mulf %91, %8 : vector<2x512xf32>
    %93 = arith.addf %89, %92 : vector<2x512xf32>
    %94 = vector.extract_strided_slice %1 {offsets = [14, 0], sizes = [1, 512], strides = [1, 1]} : vector<16x512xf32> to vector<1x512xf32>
    %95 = vector.broadcast %94 : vector<1x512xf32> to vector<2x512xf32>
    %96 = arith.mulf %95, %11 : vector<2x512xf32>
    %97 = arith.addf %93, %96 : vector<2x512xf32>
    %98 = vector.extract_strided_slice %1 {offsets = [15, 0], sizes = [1, 512], strides = [1, 1]} : vector<16x512xf32> to vector<1x512xf32>
    %99 = vector.broadcast %98 : vector<1x512xf32> to vector<2x512xf32>
    %100 = arith.mulf %99, %14 : vector<2x512xf32>
    %101 = arith.addf %97, %100 : vector<2x512xf32>
    %cst_36 = arith.constant 0.000000e+00 : f32
    %102 = vector.broadcast %cst_36 : f32 to vector<2x512xf32>
    %103 = arith.maximumf %101, %102 : vector<2x512xf32>
    %c0_37 = arith.constant 0 : index
    %c3_38 = arith.constant 3 : index
    %c0_39 = arith.constant 0 : index
    %c0_40 = arith.constant 0 : index
    %104 = vector.load %arg6[%c0_37, %c3_38, %c0_39, %c0_40] : memref<1x4x2x512xf32, #tpu.memory_space<vmem>>, vector<1x1x2x512xf32>
    %105 = vector.shape_cast %104 : vector<1x1x2x512xf32> to vector<2x512xf32>
    %106 = vector.shape_cast %103 : vector<2x512xf32> to vector<1x1x2x512xf32>
    tpu.vector_store %arg6[%c0_37, %c3_38, %c0_39, %c0_40], %106 {strides = array<i32>} : memref<1x4x2x512xf32, #tpu.memory_space<vmem>>, vector<1x1x2x512xf32>,
    return
  }
  func.func @transform_0(%arg0: i32, %arg1: i32) -> (i32, i32, i32, i32) {
    %c0_i32 = arith.constant 0 : i32
    %c0_i32_0 = arith.constant 0 : i32
    %c0_i32_1 = arith.constant 0 : i32
    return %arg0, %c0_i32, %arg1, %c0_i32_0 : i32, i32, i32, i32
  }
  func.func @transform_1(%arg0: i32, %arg1: i32) -> (i32, i32) {
    %c0_i32 = arith.constant 0 : i32
    %c0_i32_0 = arith.constant 0 : i32
    %c0_i32_1 = arith.constant 0 : i32
    return %c0_i32, %c0_i32_0 : i32, i32
  }
  func.func @transform_2(%arg0: i32, %arg1: i32) -> (i32, i32) {
    %c0_i32 = arith.constant 0 : i32
    %c0_i32_0 = arith.constant 0 : i32
    %c0_i32_1 = arith.constant 0 : i32
    return %c0_i32, %c0_i32_0 : i32, i32
  }
  func.func @transform_3(%arg0: i32, %arg1: i32) -> (i32, i32) {
    %c0_i32 = arith.constant 0 : i32
    %c0_i32_0 = arith.constant 0 : i32
    %c0_i32_1 = arith.constant 0 : i32
    return %c0_i32, %c0_i32_0 : i32, i32
  }
  func.func @transform_4(%arg0: i32, %arg1: i32) -> (i32, i32, i32, i32) {
    %c0_i32 = arith.constant 0 : i32
    %c0_i32_0 = arith.constant 0 : i32
    %c0_i32_1 = arith.constant 0 : i32
    return %arg0, %c0_i32, %arg1, %c0_i32_0 : i32, i32, i32, i32
  }
}

</mosaic_0001>

<llo_original>
// kernel: tpu_custom_call.1
$region0: #{tpu_custom_call.1}
  #allocation0 [shape = 'u32[]', space=smem, size = 0x4, offset = 0x4, fixed_abs, tag = 'smem constant byte address 0x4 - core index']
  #allocation1 [shape = 'u32[144,128]{1,0:T(1,128)}', space=vmem, size = 0x12000, scoped, tag = 'internal scratch']
  %s0 = inlined_call_operand.hbm [shape: f32[2,4,2,128], index: 0, kind: input, shape index: {}]
  %s1 = inlined_call_operand.hbm [shape: f32[128,512], index: 1, kind: input, shape index: {}]
  %s2 = inlined_call_operand.hbm [shape: f32[16,512], index: 2, kind: input, shape index: {}]
  %s3 = inlined_call_operand.hbm [shape: f32[4,512], index: 3, kind: input, shape index: {}]
  %s4 = inlined_call_operand.hbm [shape: f32[2,4,2,512], index: 4, kind: output, shape index: {}]
  %s5 = sld [smem:[#allocation0]]
  $region65: #{tpu_custom_call.1} parent=0
    _
  %s7 = ssub.s32 1, %s5
  %s8 = scalar_select 0, %s7, %s5
  $region1: #{tpu_custom_call.1} parent=0
    #allocation2 [shape = 'u8[8192]{0}', space=vmem, size = 0x2000, scoped, tag = 'input window, operand 0']
    #allocation3 [shape = 's32[2]{0}', space=sflag, size = 0x8, scoped, tag = 'scoped memory for tpu_custom_call.1']
    #allocation4 [shape = 's32[2]{0}', space=sflag, size = 0x8, scoped, tag = 'scoped memory for tpu_custom_call.1']
    #allocation5 [shape = 'u8[262144]{0}', space=vmem, size = 0x40000, scoped, tag = 'input window, operand 1, single buffered']
    #allocation6 [shape = 's32[1]{0}', space=sflag, size = 0x4, scoped, tag = 'scoped memory for tpu_custom_call.1']
    #allocation7 [shape = 'u8[32768]{0}', space=vmem, size = 0x8000, scoped, tag = 'input window, operand 2, single buffered']
    #allocation8 [shape = 'u8[8192]{0}', space=vmem, size = 0x2000, scoped, tag = 'input window, operand 3, single buffered']
    #allocation9 [shape = 's32[1]{0}', space=sflag, size = 0x4, scoped, tag = 'scoped memory for tpu_custom_call.1']
    #allocation10 [shape = 'u8[32768]{0}', space=vmem, size = 0x8000, scoped, tag = 'output window, operand 0']
    %9 = vsyncpa [#allocation3], 0
    %s10 = scalar_lea.sflag [#allocation3], 1
    %11 = vsyncpa %s10, 0
    %12 = vsyncpa [#allocation6], 0
    %13 = vsyncpa [#allocation9], 0
    %14 = vsyncpa [#allocation4], 0
    %s15 = scalar_lea.sflag [#allocation4], 1
    %16 = vsyncpa %s15, 0
    loop: start=0, step=1, limit=4
    $region2: #{tpu_custom_call.1} parent=1 // loop_pre_header
      _
    $region3: #{tpu_custom_call.1} parent=1 // loop_header
      %s18 = sphi 0, %s22
      %p19 = scmp.ge.s32.totalorder %s18, 4
      %s25 = sphi 0, %s37
      %s26 = sphi 0, %s33
      %s27 = sphi 0, %s25
      %s28 = sphi 0, %s26
      %s29 = sphi 0, %s27
      %s30 = sphi 0, %s28
      %s42 = sphi 0, %s44
      %s45 = sphi 0, %s42
      %s46 = sphi 0, %s45
      %s62 = sphi 0, %s46
      %s66 = sphi 0, %s66
      %s68 = sphi 0, %s66
      %s69 = sphi 0, %s68
      %s83 = sphi 0, %s69
      %s87 = sphi 0, %s87
      %s89 = sphi 0, %s87
      %s90 = sphi 0, %s89
      %s104 = sphi 0, %s90
      %s108 = sphi 0, %s108
      %s110 = sphi 0, %s108
      %s111 = sphi 0, %s110
      %s125 = sphi 0, %s111
      %s133 = sphi 0, %s135
      %s136 = sphi 0, %s133
      %s137 = sphi 0, %s136
      %s153 = sphi 0, %s137
    $region4: #{tpu_custom_call.1} parent=1 // loop_header_branch
      %21 = sbr.rel (%p19) target = $region8
    $region5: #{tpu_custom_call.1} parent=1 // loop_body
      %s23 = ssub.s32 %s18, 1
      %s24 = ssub.s32 %s18, 2
      %s31 = sadd.s32 1, %s26
      %p32 = scmp.ge.s32.totalorder %s31, 1
      %s33 = scalar_select %p32, 0, %s31
      %s34 = sadd.s32 1, %s25
      %s35 = scalar_select %p32, %s34, %s25
      %p36 = scmp.ge.s32.totalorder %s35, 2
      %s37 = scalar_select %p36, 0, %s35
      %s38 = ssub.s32 %s25, %s37
      %s39 = ssub.s32 %s26, %s33
      %s40 = sor.u32 %s38, %s39
      %p41 = scmp.eq.s32.totalorder %s40, 0
      %s43 = sadd.s32 %s42, 1
      %s44 = scalar_select %p41, %s42, %s43
      %p47 = pneg %p41
      %p48 = scmp.eq.s32.totalorder %s18, 1
      %p49 = por %p47, %p48
      %p50 = scmp.ne.s32.totalorder %s42, %s45
      %p51 = scmp.eq.s32.totalorder %s18, 0
      %p52 = por %p50, %p51
      %p53 = scmp.ne.s32.totalorder %s42, %s45
      %p54 = scmp.eq.s32.totalorder %s23, 1
      %p55 = por %p53, %p54
      %p56 = scmp.ne.s32.totalorder %s45, %s46
      %p57 = scmp.eq.s32.totalorder %s23, 0
      %p58 = por %p56, %p57
      %p59 = scmp.ne.s32.totalorder %s45, %s46
      %p60 = scmp.eq.s32.totalorder %s24, 1
      %p61 = por %p59, %p60
      %p63 = scmp.ne.s32.totalorder %s46, %s62
      %p64 = scmp.eq.s32.totalorder %s24, 0
      %p65 = por %p63, %p64
      %s67 = sadd.s32 %s66, 1
      %p70 = scmp.eq.s32.totalorder %s18, 1
      %p71 = scmp.ne.s32.totalorder %s66, %s68
      %p72 = scmp.eq.s32.totalorder %s18, 0
      %p73 = por %p71, %p72
      %p74 = scmp.ne.s32.totalorder %s66, %s68
      %p75 = scmp.eq.s32.totalorder %s23, 1
      %p76 = por %p74, %p75
      %p77 = scmp.ne.s32.totalorder %s68, %s69
      %p78 = scmp.eq.s32.totalorder %s23, 0
      %p79 = por %p77, %p78
      %p80 = scmp.ne.s32.totalorder %s68, %s69
      %p81 = scmp.eq.s32.totalorder %s24, 1
      %p82 = por %p80, %p81
      %p84 = scmp.ne.s32.totalorder %s69, %s83
      %p85 = scmp.eq.s32.totalorder %s24, 0
      %p86 = por %p84, %p85
      %s88 = sadd.s32 %s87, 1
      %p91 = scmp.eq.s32.totalorder %s18, 1
      %p92 = scmp.ne.s32.totalorder %s87, %s89
      %p93 = scmp.eq.s32.totalorder %s18, 0
      %p94 = por %p92, %p93
      %p95 = scmp.ne.s32.totalorder %s87, %s89
      %p96 = scmp.eq.s32.totalorder %s23, 1
      %p97 = por %p95, %p96
      %p98 = scmp.ne.s32.totalorder %s89, %s90
      %p99 = scmp.eq.s32.totalorder %s23, 0
      %p100 = por %p98, %p99
      %p101 = scmp.ne.s32.totalorder %s89, %s90
      %p102 = scmp.eq.s32.totalorder %s24, 1
      %p103 = por %p101, %p102
      %p105 = scmp.ne.s32.totalorder %s90, %s104
      %p106 = scmp.eq.s32.totalorder %s24, 0
      %p107 = por %p105, %p106
      %s109 = sadd.s32 %s108, 1
      %p112 = scmp.eq.s32.totalorder %s18, 1
      %p113 = scmp.ne.s32.totalorder %s108, %s110
      %p114 = scmp.eq.s32.totalorder %s18, 0
      %p115 = por %p113, %p114
      %p116 = scmp.ne.s32.totalorder %s108, %s110
      %p117 = scmp.eq.s32.totalorder %s23, 1
      %p118 = por %p116, %p117
      %p119 = scmp.ne.s32.totalorder %s110, %s111
      %p120 = scmp.eq.s32.totalorder %s23, 0
      %p121 = por %p119, %p120
      %p122 = scmp.ne.s32.totalorder %s110, %s111
      %p123 = scmp.eq.s32.totalorder %s24, 1
      %p124 = por %p122, %p123
      %p126 = scmp.ne.s32.totalorder %s111, %s125
      %p127 = scmp.eq.s32.totalorder %s24, 0
      %p128 = por %p126, %p127
      %s129 = ssub.s32 %s25, %s37
      %s130 = ssub.s32 %s26, %s33
      %s131 = sor.u32 %s129, %s130
      %p132 = scmp.eq.s32.totalorder %s131, 0
      %s134 = sadd.s32 %s133, 1
      %s135 = scalar_select %p132, %s133, %s134
      %p138 = pneg %p132
      %p139 = scmp.eq.s32.totalorder %s18, 1
      %p140 = por %p138, %p139
      %p141 = scmp.ne.s32.totalorder %s133, %s136
      %p142 = scmp.eq.s32.totalorder %s18, 0
      %p143 = por %p141, %p142
      %p144 = scmp.ne.s32.totalorder %s133, %s136
      %p145 = scmp.eq.s32.totalorder %s23, 1
      %p146 = por %p144, %p145
      %p147 = scmp.ne.s32.totalorder %s136, %s137
      %p148 = scmp.eq.s32.totalorder %s23, 0
      %p149 = por %p147, %p148
      %p150 = scmp.ne.s32.totalorder %s136, %s137
      %p151 = scmp.eq.s32.totalorder %s24, 1
      %p152 = por %p150, %p151
      %p154 = scmp.ne.s32.totalorder %s137, %s153
      %p155 = scmp.eq.s32.totalorder %s24, 0
      %p156 = por %p154, %p155
      %p157 = scmp.le.s32.totalorder 1, %s18
      %p158 = scmp.lt.s32.totalorder %s18, 3
      %p159 = pnand %p157, %p158
      %p160 = pneg %p159
      // Predicated region
      $region9: #{tpu_custom_call.1} parent=5 // pred_check
        _
      $region10: #{tpu_custom_call.1} parent=5 // pred_check_branch
        %162 = sbr.rel (%p159) target = $region12
      $region11: #{tpu_custom_call.1} parent=5 // pred_region
        %s163 = ssub.s32 %s18, 1
        // Predicated region
        $region13: #{tpu_custom_call.1} parent=11 // pred_check
          %p164 = pneg %p79
        $region14: #{tpu_custom_call.1} parent=11 // pred_check_branch
          %166 = sbr.rel (%p164) target = $region16
        $region15: #{tpu_custom_call.1} parent=11 // pred_region
          %s168 = ssub.s32 8192, 8192
          %169 = vsyncadd [#allocation6], %s168
          %s170 = sshll.u32 [#allocation5], 4
          %s171 = int_to_ptr.vmem [resolvable:$true] %s170
          %176 = dma.hbm_to_vmem [thread:$0]  %s1, 8192, %s171, [#allocation6], 512, 512, 32
        $region16: #{tpu_custom_call.1} parent=11 // pred_fallthru
          _
        // Predicated region
        $region17: #{tpu_custom_call.1} parent=11 // pred_check
          %p177 = pneg %p100
        $region18: #{tpu_custom_call.1} parent=11 // pred_check_branch
          %179 = sbr.rel (%p177) target = $region20
        $region19: #{tpu_custom_call.1} parent=11 // pred_region
          %s181 = ssub.s32 1024, 1024
          %182 = vsyncadd [#allocation6], %s181
          %s183 = sshll.u32 [#allocation7], 4
          %s184 = int_to_ptr.vmem [resolvable:$true] %s183
          %189 = dma.hbm_to_vmem [thread:$0]  %s2, 1024, %s184, [#allocation6], 512, 512, 32
        $region20: #{tpu_custom_call.1} parent=11 // pred_fallthru
          _
        // Predicated region
        $region21: #{tpu_custom_call.1} parent=11 // pred_check
          %p190 = pneg %p121
        $region22: #{tpu_custom_call.1} parent=11 // pred_check_branch
          %192 = sbr.rel (%p190) target = $region24
        $region23: #{tpu_custom_call.1} parent=11 // pred_region
          %s194 = ssub.s32 256, 256
          %195 = vsyncadd [#allocation9], %s194
          %s197 = sshll.u32 [#allocation8], 4
          %s198 = int_to_ptr.vmem [resolvable:$true] %s197
          %200 = dma.hbm_to_vmem [thread:$0]  %s3, 256, %s198, [#allocation9]
        $region24: #{tpu_custom_call.1} parent=11 // pred_fallthru
          _
      $region12: #{tpu_custom_call.1} parent=5 // pred_fallthru
        _
      %p201 = scmp.lt.s32.totalorder %s18, 2
      // Predicated region
      $region25: #{tpu_custom_call.1} parent=5 // pred_check
        %p202 = pneg %p201
      $region26: #{tpu_custom_call.1} parent=5 // pred_check_branch
        %204 = sbr.rel (%p202) target = $region28
      $region27: #{tpu_custom_call.1} parent=5 // pred_region
        // Predicated region
        $region29: #{tpu_custom_call.1} parent=27 // pred_check
          %p205 = pneg %p52
        $region30: #{tpu_custom_call.1} parent=27 // pred_check_branch
          %207 = sbr.rel (%p205) target = $region32
        $region31: #{tpu_custom_call.1} parent=27 // pred_region
          %s208 = sand.u32 %s42, 1
          %s209 = scalar_lea.sflag [#allocation3], %s208
          %s210 = sand.u32 %s42, 1
          %s211 = smul.addr %s210, 8
          %s212 = scalar_lea.vmem [#allocation2], %s211
          %s214 = ssub.s32 128, 128
          %215 = vsyncadd %s209, %s214
          %s216 = smul.addr %s25, 4
          %s217 = sadd.s32 %s26, %s216
          %s218 = smul.addr %s217, 32
          %s219 = scalar_lea.hbm %s0, %s218
          %s220 = sshll.u32 %s212, 4
          %s221 = int_to_ptr.vmem [resolvable:$true] %s220
          %226 = dma.hbm_to_vmem [thread:$0]  %s219, 128, %s221, %s209, 32, 32, 2
        $region32: #{tpu_custom_call.1} parent=27 // pred_fallthru
          _
      $region28: #{tpu_custom_call.1} parent=5 // pred_fallthru
        _
      %p227 = scmp.le.s32.totalorder 1, %s18
      %p228 = scmp.lt.s32.totalorder %s18, 3
      %p229 = pnand %p227, %p228
      %p230 = pneg %p229
      // Predicated region
      $region33: #{tpu_custom_call.1} parent=5 // pred_check
        _
      $region34: #{tpu_custom_call.1} parent=5 // pred_check_branch
        %232 = sbr.rel (%p229) target = $region36
      $region35: #{tpu_custom_call.1} parent=5 // pred_region
        %s233 = ssub.s32 %s18, 1
        %s234 = sand.u32 %s45, 1
        %s235 = scalar_lea.sflag [#allocation3], %s234
        %s236 = sand.u32 %s45, 1
        %s237 = smul.addr %s236, 8
        %s238 = scalar_lea.vmem [#allocation2], %s237
        // Predicated region
        $region37: #{tpu_custom_call.1} parent=35 // pred_check
          %p239 = pneg %p58
        $region38: #{tpu_custom_call.1} parent=35 // pred_check_branch
          %241 = sbr.rel (%p239) target = $region40
        $region39: #{tpu_custom_call.1} parent=35 // pred_region
          %242 = dma.done %s235, 128
        $region40: #{tpu_custom_call.1} parent=35 // pred_fallthru
          _
        // Predicated region
        $region41: #{tpu_custom_call.1} parent=35 // pred_check
          %p243 = pneg %p79
        $region42: #{tpu_custom_call.1} parent=35 // pred_check_branch
          %245 = sbr.rel (%p243) target = $region44
        $region43: #{tpu_custom_call.1} parent=35 // pred_region
          %246 = dma.done [#allocation6], 8192
        $region44: #{tpu_custom_call.1} parent=35 // pred_fallthru
          _
        // Predicated region
        $region45: #{tpu_custom_call.1} parent=35 // pred_check
          %p247 = pneg %p100
        $region46: #{tpu_custom_call.1} parent=35 // pred_check_branch
          %249 = sbr.rel (%p247) target = $region48
        $region47: #{tpu_custom_call.1} parent=35 // pred_region
          %250 = dma.done [#allocation6], 1024
        $region48: #{tpu_custom_call.1} parent=35 // pred_fallthru
          _
        // Predicated region
        $region49: #{tpu_custom_call.1} parent=35 // pred_check
          %p251 = pneg %p121
        $region50: #{tpu_custom_call.1} parent=35 // pred_check_branch
          %253 = sbr.rel (%p251) target = $region52
        $region51: #{tpu_custom_call.1} parent=35 // pred_region
          %254 = dma.done [#allocation9], 256
        $region52: #{tpu_custom_call.1} parent=35 // pred_fallthru
          _
        %s255 = sand.u32 %s45, 1
        %s256 = scalar_lea.sflag [#allocation3], %s255
        %s257 = sand.u32 %s45, 1
        %s258 = smul.addr %s257, 8
        %s259 = scalar_lea.vmem [#allocation2], %s258
        %p260 = pneg %p58
        %p261 = pneg %p55
        %p262 = pneg %p79
        %p263 = pneg %p76
        %p264 = pneg %p100
        %p265 = pneg %p97
        %p266 = pneg %p121
        %p267 = pneg %p118
        %p268 = pneg %p149
        %p269 = pneg %p146
        %s270 = sand.u32 %s136, 1
        %s271 = scalar_lea.sflag [#allocation4], %s270
        %s272 = sand.u32 %s136, 1
        %s273 = smul.addr %s272, 32
        %s274 = scalar_lea.vmem [#allocation10], %s273
        %v275 = vld [vmem:[#allocation5] sm:$0xff]
        %v276 = vld [vmem:[#allocation5 + $0x8] sm:$0xff]
        %v277 = vld [vmem:[#allocation5 + $0x10] sm:$0xff]
        %v278 = vld [vmem:[#allocation5 + $0x18] sm:$0xff]
        %v279 = vld [vmem:[#allocation5 + $0x20] sm:$0xff]
        %v280 = vld [vmem:[#allocation5 + $0x28] sm:$0xff]
        %v281 = vld [vmem:[#allocation5 + $0x30] sm:$0xff]
        %v282 = vld [vmem:[#allocation5 + $0x38] sm:$0xff]
        %v283 = vld [vmem:[#allocation5 + $0x40] sm:$0xff]
        %v284 = vld [vmem:[#allocation5 + $0x48] sm:$0xff]
        %v285 = vld [vmem:[#allocation5 + $0x50] sm:$0xff]
        %v286 = vld [vmem:[#allocation5 + $0x58] sm:$0xff]
        %v287 = vld [vmem:[#allocation5 + $0x60] sm:$0xff]
        %v288 = vld [vmem:[#allocation5 + $0x68] sm:$0xff]
        %v289 = vld [vmem:[#allocation5 + $0x70] sm:$0xff]
        %v290 = vld [vmem:[#allocation5 + $0x78] sm:$0xff]
        %v291 = vld [vmem:[#allocation5 + $0x80] sm:$0xff]
        %v292 = vld [vmem:[#allocation5 + $0x88] sm:$0xff]
        %v293 = vld [vmem:[#allocation5 + $0x90] sm:$0xff]
        %v294 = vld [vmem:[#allocation5 + $0x98] sm:$0xff]
        %v295 = vld [vmem:[#allocation5 + $0xa0] sm:$0xff]
        %v296 = vld [vmem:[#allocation5 + $0xa8] sm:$0xff]
        %v297 = vld [vmem:[#allocation5 + $0xb0] sm:$0xff]
        %v298 = vld [vmem:[#allocation5 + $0xb8] sm:$0xff]
        %v299 = vld [vmem:[#allocation5 + $0xc0] sm:$0xff]
        %v300 = vld [vmem:[#allocation5 + $0xc8] sm:$0xff]
        %v301 = vld [vmem:[#allocation5 + $0xd0] sm:$0xff]
        %v302 = vld [vmem:[#allocation5 + $0xd8] sm:$0xff]
        %v303 = vld [vmem:[#allocation5 + $0xe0] sm:$0xff]
        %v304 = vld [vmem:[#allocation5 + $0xe8] sm:$0xff]
        %v305 = vld [vmem:[#allocation5 + $0xf0] sm:$0xff]
        %v306 = vld [vmem:[#allocation5 + $0xf8] sm:$0xff]
        %v307 = vld [vmem:[#allocation5 + $0x100] sm:$0xff]
        %v308 = vld [vmem:[#allocation5 + $0x108] sm:$0xff]
        %v309 = vld [vmem:[#allocation5 + $0x110] sm:$0xff]
        %v310 = vld [vmem:[#allocation5 + $0x118] sm:$0xff]
        %v311 = vld [vmem:[#allocation5 + $0x120] sm:$0xff]
        %v312 = vld [vmem:[#allocation5 + $0x128] sm:$0xff]
        %v313 = vld [vmem:[#allocation5 + $0x130] sm:$0xff]
        %v314 = vld [vmem:[#allocation5 + $0x138] sm:$0xff]
        %v315 = vld [vmem:[#allocation5 + $0x140] sm:$0xff]
        %v316 = vld [vmem:[#allocation5 + $0x148] sm:$0xff]
        %v317 = vld [vmem:[#allocation5 + $0x150] sm:$0xff]
        %v318 = vld [vmem:[#allocation5 + $0x158] sm:$0xff]
        %v319 = vld [vmem:[#allocation5 + $0x160] sm:$0xff]
        %v320 = vld [vmem:[#allocation5 + $0x168] sm:$0xff]
        %v321 = vld [vmem:[#allocation5 + $0x170] sm:$0xff]
        %v322 = vld [vmem:[#allocation5 + $0x178] sm:$0xff]
        %v323 = vld [vmem:[#allocation5 + $0x180] sm:$0xff]
        %v324 = vld [vmem:[#allocation5 + $0x188] sm:$0xff]
        %v325 = vld [vmem:[#allocation5 + $0x190] sm:$0xff]
        %v326 = vld [vmem:[#allocation5 + $0x198] sm:$0xff]
        %v327 = vld [vmem:[#allocation5 + $0x1a0] sm:$0xff]
        %v328 = vld [vmem:[#allocation5 + $0x1a8] sm:$0xff]
        %v329 = vld [vmem:[#allocation5 + $0x1b0] sm:$0xff]
        %v330 = vld [vmem:[#allocation5 + $0x1b8] sm:$0xff]
        %v331 = vld [vmem:[#allocation5 + $0x1c0] sm:$0xff]
        %v332 = vld [vmem:[#allocation5 + $0x1c8] sm:$0xff]
        %v333 = vld [vmem:[#allocation5 + $0x1d0] sm:$0xff]
        %v334 = vld [vmem:[#allocation5 + $0x1d8] sm:$0xff]
        %v335 = vld [vmem:[#allocation5 + $0x1e0] sm:$0xff]
        %v336 = vld [vmem:[#allocation5 + $0x1e8] sm:$0xff]
        %v337 = vld [vmem:[#allocation5 + $0x1f0] sm:$0xff]
        %v338 = vld [vmem:[#allocation5 + $0x1f8] sm:$0xff]
        %v339 = vld [vmem:[#allocation7] sm:$0xff]
        %v340 = vld [vmem:[#allocation7 + $0x8] sm:$0xff]
        %v341 = vld [vmem:[#allocation7 + $0x10] sm:$0xff]
        %v342 = vld [vmem:[#allocation7 + $0x18] sm:$0xff]
        %v343 = vld [vmem:[#allocation7 + $0x20] sm:$0xff]
        %v344 = vld [vmem:[#allocation7 + $0x28] sm:$0xff]
        %v345 = vld [vmem:[#allocation7 + $0x30] sm:$0xff]
        %v346 = vld [vmem:[#allocation7 + $0x38] sm:$0xff]
        %v347 = vld [vmem:[#allocation8] sm:$0xff]
        %v348 = vld [vmem:[#allocation8 + $0x8] sm:$0xff]
        %v349 = vld [vmem:[%s238] sm:$0x3]
        %350 = vmatprep.subr.mxu0 %v276
        %351 = vmatpush1.msra.mxu0 %v275
        %352 = vmatprep.subr.mxu0 %v280
        %353 = vmatpush1.msra.mxu0 %v279
        %354 = vmatprep.subr.mxu0 %v284
        %355 = vmatpush1.msra.mxu0 %v283
        %356 = vmatprep.subr.mxu0 %v288
        %357 = vmatpush1.msra.mxu0 %v287
        %358 = vmatprep.subr.mxu0 %v292
        %359 = vmatpush1.msra.mxu0 %v291
        %360 = vmatprep.subr.mxu0 %v296
        %361 = vmatpush1.msra.mxu0 %v295
        %362 = vmatprep.subr.mxu0 %v300
        %363 = vmatpush1.msra.mxu0 %v299
        %364 = vmatprep.subr.mxu0 %v304
        %365 = vmatpush1.msra.mxu0 %v303
        %366 = vmatprep.subr.mxu0 %v308
        %367 = vmatpush1.msra.mxu0 %v307
        %368 = vmatprep.subr.mxu0 %v312
        %369 = vmatpush1.msra.mxu0 %v311
        %370 = vmatprep.subr.mxu0 %v316
        %371 = vmatpush1.msra.mxu0 %v315
        %372 = vmatprep.subr.mxu0 %v320
        %373 = vmatpush1.msra.mxu0 %v319
        %374 = vmatprep.subr.mxu0 %v324
        %375 = vmatpush1.msra.mxu0 %v323
        %376 = vmatprep.subr.mxu0 %v328
        %377 = vmatpush1.msra.mxu0 %v327
        %378 = vmatprep.subr.mxu0 %v332
        %379 = vmatpush1.msra.mxu0 %v331
        %380 = vmatprep.subr.mxu0 %v336
        %381 = vmatpush1.msra.mxu0 %v335
        %382 = vmatprep.subr.mxu0 0.0
        %383 = vmatpush1.msra.mxu0 0.0
        %384 = vmatprep.subr.mxu0 0.0
        %385 = vmatpush1.msra.mxu0 0.0
        %386 = vmatprep.subr.mxu0 0.0
        %387 = vmatpush1.msra.mxu0 0.0
        %388 = vmatprep.subr.mxu0 0.0
        %389 = vmatpush1.msra.mxu0 0.0
        %390 = vmatprep.subr.mxu0 0.0
        %391 = vmatpush1.msra.mxu0 0.0
        %392 = vmatprep.subr.mxu0 0.0
        %393 = vmatpush1.msra.mxu0 0.0
        %394 = vmatprep.subr.mxu0 0.0
        %395 = vmatpush1.msra.mxu0 0.0
        %396 = vmatprep.subr.mxu0 0.0
        %397 = vmatpush1.msra.mxu0 0.0
        %398 = vmatprep.subr.mxu0 0.0
        %399 = vmatpush1.msra.mxu0 0.0
        %400 = vmatprep.subr.mxu0 0.0
        %401 = vmatpush1.msra.mxu0 0.0
        %402 = vmatprep.subr.mxu0 0.0
        %403 = vmatpush1.msra.mxu0 0.0
        %404 = vmatprep.subr.mxu0 0.0
        %405 = vmatpush1.msra.mxu0 0.0
        %406 = vmatprep.subr.mxu0 0.0
        %407 = vmatpush1.msra.mxu0 0.0
        %408 = vmatprep.subr.mxu0 0.0
        %409 = vmatpush1.msra.mxu0 0.0
        %410 = vmatprep.subr.mxu0 0.0
        %411 = vmatpush1.msra.mxu0 0.0
        %412 = vmatprep.subr.mxu0 0.0
        %413 = vmatpush1.msra.mxu0 0.0
        %414 = vmatprep.mubr.f32.mxu0 0.0
        %415 = vmatmul.mubr.f32.gmra.mrb[0].mxu0 %v349
        %v416 = vpop.f32.mrb[0].mxu0
        %v417 = vadd.f32 0.0, %v416
        %v418 = vpop.f32.mrb[0].mxu0
        %v419 = vadd.f32 0.0, %v418
        %420 = vdwg.mxu0
        %421 = vmatprep.subr.mxu0 %v278
        %422 = vmatpush1.msra.mxu0 %v277
        %423 = vmatprep.subr.mxu0 %v282
        %424 = vmatpush1.msra.mxu0 %v281
        %425 = vmatprep.subr.mxu0 %v286
        %426 = vmatpush1.msra.mxu0 %v285
        %427 = vmatprep.subr.mxu0 %v290
        %428 = vmatpush1.msra.mxu0 %v289
        %429 = vmatprep.subr.mxu0 %v294
        %430 = vmatpush1.msra.mxu0 %v293
        %431 = vmatprep.subr.mxu0 %v298
        %432 = vmatpush1.msra.mxu0 %v297
        %433 = vmatprep.subr.mxu0 %v302
        %434 = vmatpush1.msra.mxu0 %v301
        %435 = vmatprep.subr.mxu0 %v306
        %436 = vmatpush1.msra.mxu0 %v305
        %437 = vmatprep.subr.mxu0 %v310
        %438 = vmatpush1.msra.mxu0 %v309
        %439 = vmatprep.subr.mxu0 %v314
        %440 = vmatpush1.msra.mxu0 %v313
        %441 = vmatprep.subr.mxu0 %v318
        %442 = vmatpush1.msra.mxu0 %v317
        %443 = vmatprep.subr.mxu0 %v322
        %444 = vmatpush1.msra.mxu0 %v321
        %445 = vmatprep.subr.mxu0 %v326
        %446 = vmatpush1.msra.mxu0 %v325
        %447 = vmatprep.subr.mxu0 %v330
        %448 = vmatpush1.msra.mxu0 %v329
        %449 = vmatprep.subr.mxu0 %v334
        %450 = vmatpush1.msra.mxu0 %v333
        %451 = vmatprep.subr.mxu0 %v338
        %452 = vmatpush1.msra.mxu0 %v337
        %453 = vmatprep.subr.mxu0 0.0
        %454 = vmatpush1.msra.mxu0 0.0
        %455 = vmatprep.subr.mxu0 0.0
        %456 = vmatpush1.msra.mxu0 0.0
        %457 = vmatprep.subr.mxu0 0.0
        %458 = vmatpush1.msra.mxu0 0.0
        %459 = vmatprep.subr.mxu0 0.0
        %460 = vmatpush1.msra.mxu0 0.0
        %461 = vmatprep.subr.mxu0 0.0
        %462 = vmatpush1.msra.mxu0 0.0
        %463 = vmatprep.subr.mxu0 0.0
        %464 = vmatpush1.msra.mxu0 0.0
        %465 = vmatprep.subr.mxu0 0.0
        %466 = vmatpush1.msra.mxu0 0.0
        %467 = vmatprep.subr.mxu0 0.0
        %468 = vmatpush1.msra.mxu0 0.0
        %469 = vmatprep.subr.mxu0 0.0
        %470 = vmatpush1.msra.mxu0 0.0
        %471 = vmatprep.subr.mxu0 0.0
        %472 = vmatpush1.msra.mxu0 0.0
        %473 = vmatprep.subr.mxu0 0.0
        %474 = vmatpush1.msra.mxu0 0.0
        %475 = vmatprep.subr.mxu0 0.0
        %476 = vmatpush1.msra.mxu0 0.0
        %477 = vmatprep.subr.mxu0 0.0
        %478 = vmatpush1.msra.mxu0 0.0
        %479 = vmatprep.subr.mxu0 0.0
        %480 = vmatpush1.msra.mxu0 0.0
        %481 = vmatprep.subr.mxu0 0.0
        %482 = vmatpush1.msra.mxu0 0.0
        %483 = vmatprep.subr.mxu0 0.0
        %484 = vmatpush1.msra.mxu0 0.0
        %485 = vmatprep.mubr.f32.mxu0 0.0
        %486 = vmatmul.mubr.f32.gmra.mrb[0].mxu0 %v349
        %v487 = vpop.f32.mrb[0].mxu0
        %v488 = vadd.f32 0.0, %v487
        %v489 = vpop.f32.mrb[0].mxu0
        %v490 = vadd.f32 0.0, %v489
        %491 = vdwg.mxu0
        %s492 = scalar_lea.vmem %s238, 2 [#allocation2]
        %v493 = vld [vmem:[%s492] sm:$0x3]
        %494 = vmatprep.subr.mxu0 %v276
        %495 = vmatpush1.msra.mxu0 %v275
        %496 = vmatprep.subr.mxu0 %v280
        %497 = vmatpush1.msra.mxu0 %v279
        %498 = vmatprep.subr.mxu0 %v284
        %499 = vmatpush1.msra.mxu0 %v283
        %500 = vmatprep.subr.mxu0 %v288
        %501 = vmatpush1.msra.mxu0 %v287
        %502 = vmatprep.subr.mxu0 %v292
        %503 = vmatpush1.msra.mxu0 %v291
        %504 = vmatprep.subr.mxu0 %v296
        %505 = vmatpush1.msra.mxu0 %v295
        %506 = vmatprep.subr.mxu0 %v300
        %507 = vmatpush1.msra.mxu0 %v299
        %508 = vmatprep.subr.mxu0 %v304
        %509 = vmatpush1.msra.mxu0 %v303
        %510 = vmatprep.subr.mxu0 %v308
        %511 = vmatpush1.msra.mxu0 %v307
        %512 = vmatprep.subr.mxu0 %v312
        %513 = vmatpush1.msra.mxu0 %v311
        %514 = vmatprep.subr.mxu0 %v316
        %515 = vmatpush1.msra.mxu0 %v315
        %516 = vmatprep.subr.mxu0 %v320
        %517 = vmatpush1.msra.mxu0 %v319
        %518 = vmatprep.subr.mxu0 %v324
        %519 = vmatpush1.msra.mxu0 %v323
        %520 = vmatprep.subr.mxu0 %v328
        %521 = vmatpush1.msra.mxu0 %v327
        %522 = vmatprep.subr.mxu0 %v332
        %523 = vmatpush1.msra.mxu0 %v331
        %524 = vmatprep.subr.mxu0 %v336
        %525 = vmatpush1.msra.mxu0 %v335
        %526 = vmatprep.subr.mxu0 0.0
        %527 = vmatpush1.msra.mxu0 0.0
        %528 = vmatprep.subr.mxu0 0.0
        %529 = vmatpush1.msra.mxu0 0.0
        %530 = vmatprep.subr.mxu0 0.0
        %531 = vmatpush1.msra.mxu0 0.0
        %532 = vmatprep.subr.mxu0 0.0
        %533 = vmatpush1.msra.mxu0 0.0
        %534 = vmatprep.subr.mxu0 0.0
        %535 = vmatpush1.msra.mxu0 0.0
        %536 = vmatprep.subr.mxu0 0.0
        %537 = vmatpush1.msra.mxu0 0.0
        %538 = vmatprep.subr.mxu0 0.0
        %539 = vmatpush1.msra.mxu0 0.0
        %540 = vmatprep.subr.mxu0 0.0
        %541 = vmatpush1.msra.mxu0 0.0
        %542 = vmatprep.subr.mxu0 0.0
        %543 = vmatpush1.msra.mxu0 0.0
        %544 = vmatprep.subr.mxu0 0.0
        %545 = vmatpush1.msra.mxu0 0.0
        %546 = vmatprep.subr.mxu0 0.0
        %547 = vmatpush1.msra.mxu0 0.0
        %548 = vmatprep.subr.mxu0 0.0
        %549 = vmatpush1.msra.mxu0 0.0
        %550 = vmatprep.subr.mxu0 0.0
        %551 = vmatpush1.msra.mxu0 0.0
        %552 = vmatprep.subr.mxu0 0.0
        %553 = vmatpush1.msra.mxu0 0.0
        %554 = vmatprep.subr.mxu0 0.0
        %555 = vmatpush1.msra.mxu0 0.0
        %556 = vmatprep.subr.mxu0 0.0
        %557 = vmatpush1.msra.mxu0 0.0
        %558 = vmatprep.mubr.f32.mxu0 0.0
        %559 = vmatmul.mubr.f32.gmra.mrb[0].mxu0 %v493
        %v560 = vpop.f32.mrb[0].mxu0
        %v561 = vadd.f32 0.0, %v560
        %v562 = vpop.f32.mrb[0].mxu0
        %v563 = vadd.f32 0.0, %v562
        %564 = vdwg.mxu0
        %565 = vmatprep.subr.mxu0 %v278
        %566 = vmatpush1.msra.mxu0 %v277
        %567 = vmatprep.subr.mxu0 %v282
        %568 = vmatpush1.msra.mxu0 %v281
        %569 = vmatprep.subr.mxu0 %v286
        %570 = vmatpush1.msra.mxu0 %v285
        %571 = vmatprep.subr.mxu0 %v290
        %572 = vmatpush1.msra.mxu0 %v289
        %573 = vmatprep.subr.mxu0 %v294
        %574 = vmatpush1.msra.mxu0 %v293
        %575 = vmatprep.subr.mxu0 %v298
        %576 = vmatpush1.msra.mxu0 %v297
        %577 = vmatprep.subr.mxu0 %v302
        %578 = vmatpush1.msra.mxu0 %v301
        %579 = vmatprep.subr.mxu0 %v306
        %580 = vmatpush1.msra.mxu0 %v305
        %581 = vmatprep.subr.mxu0 %v310
        %582 = vmatpush1.msra.mxu0 %v309
        %583 = vmatprep.subr.mxu0 %v314
        %584 = vmatpush1.msra.mxu0 %v313
        %585 = vmatprep.subr.mxu0 %v318
        %586 = vmatpush1.msra.mxu0 %v317
        %587 = vmatprep.subr.mxu0 %v322
        %588 = vmatpush1.msra.mxu0 %v321
        %589 = vmatprep.subr.mxu0 %v326
        %590 = vmatpush1.msra.mxu0 %v325
        %591 = vmatprep.subr.mxu0 %v330
        %592 = vmatpush1.msra.mxu0 %v329
        %593 = vmatprep.subr.mxu0 %v334
        %594 = vmatpush1.msra.mxu0 %v333
        %595 = vmatprep.subr.mxu0 %v338
        %596 = vmatpush1.msra.mxu0 %v337
        %597 = vmatprep.subr.mxu0 0.0
        %598 = vmatpush1.msra.mxu0 0.0
        %599 = vmatprep.subr.mxu0 0.0
        %600 = vmatpush1.msra.mxu0 0.0
        %601 = vmatprep.subr.mxu0 0.0
        %602 = vmatpush1.msra.mxu0 0.0
        %603 = vmatprep.subr.mxu0 0.0
        %604 = vmatpush1.msra.mxu0 0.0
        %605 = vmatprep.subr.mxu0 0.0
        %606 = vmatpush1.msra.mxu0 0.0
        %607 = vmatprep.subr.mxu0 0.0
        %608 = vmatpush1.msra.mxu0 0.0
        %609 = vmatprep.subr.mxu0 0.0
        %610 = vmatpush1.msra.mxu0 0.0
        %611 = vmatprep.subr.mxu0 0.0
        %612 = vmatpush1.msra.mxu0 0.0
        %613 = vmatprep.subr.mxu0 0.0
        %614 = vmatpush1.msra.mxu0 0.0
        %615 = vmatprep.subr.mxu0 0.0
        %616 = vmatpush1.msra.mxu0 0.0
        %617 = vmatprep.subr.mxu0 0.0
        %618 = vmatpush1.msra.mxu0 0.0
        %619 = vmatprep.subr.mxu0 0.0
        %620 = vmatpush1.msra.mxu0 0.0
        %621 = vmatprep.subr.mxu0 0.0
        %622 = vmatpush1.msra.mxu0 0.0
        %623 = vmatprep.subr.mxu0 0.0
        %624 = vmatpush1.msra.mxu0 0.0
        %625 = vmatprep.subr.mxu0 0.0
        %626 = vmatpush1.msra.mxu0 0.0
        %627 = vmatprep.subr.mxu0 0.0
        %628 = vmatpush1.msra.mxu0 0.0
        %629 = vmatprep.mubr.f32.mxu0 0.0
        %630 = vmatmul.mubr.f32.gmra.mrb[0].mxu0 %v493
        %v631 = vpop.f32.mrb[0].mxu0
        %v632 = vadd.f32 0.0, %v631
        %v633 = vpop.f32.mrb[0].mxu0
        %v634 = vadd.f32 0.0, %v633
        %635 = vdwg.mxu0
        %s636 = scalar_lea.vmem %s238, 4 [#allocation2]
        %v637 = vld [vmem:[%s636] sm:$0x3]
        %638 = vmatprep.subr.mxu0 %v276
        %639 = vmatpush1.msra.mxu0 %v275
        %640 = vmatprep.subr.mxu0 %v280
        %641 = vmatpush1.msra.mxu0 %v279
        %642 = vmatprep.subr.mxu0 %v284
        %643 = vmatpush1.msra.mxu0 %v283
        %644 = vmatprep.subr.mxu0 %v288
        %645 = vmatpush1.msra.mxu0 %v287
        %646 = vmatprep.subr.mxu0 %v292
        %647 = vmatpush1.msra.mxu0 %v291
        %648 = vmatprep.subr.mxu0 %v296
        %649 = vmatpush1.msra.mxu0 %v295
        %650 = vmatprep.subr.mxu0 %v300
        %651 = vmatpush1.msra.mxu0 %v299
        %652 = vmatprep.subr.mxu0 %v304
        %653 = vmatpush1.msra.mxu0 %v303
        %654 = vmatprep.subr.mxu0 %v308
        %655 = vmatpush1.msra.mxu0 %v307
        %656 = vmatprep.subr.mxu0 %v312
        %657 = vmatpush1.msra.mxu0 %v311
        %658 = vmatprep.subr.mxu0 %v316
        %659 = vmatpush1.msra.mxu0 %v315
        %660 = vmatprep.subr.mxu0 %v320
        %661 = vmatpush1.msra.mxu0 %v319
        %662 = vmatprep.subr.mxu0 %v324
        %663 = vmatpush1.msra.mxu0 %v323
        %664 = vmatprep.subr.mxu0 %v328
        %665 = vmatpush1.msra.mxu0 %v327
        %666 = vmatprep.subr.mxu0 %v332
        %667 = vmatpush1.msra.mxu0 %v331
        %668 = vmatprep.subr.mxu0 %v336
        %669 = vmatpush1.msra.mxu0 %v335
        %670 = vmatprep.subr.mxu0 0.0
        %671 = vmatpush1.msra.mxu0 0.0
        %672 = vmatprep.subr.mxu0 0.0
        %673 = vmatpush1.msra.mxu0 0.0
        %674 = vmatprep.subr.mxu0 0.0
        %675 = vmatpush1.msra.mxu0 0.0
        %676 = vmatprep.subr.mxu0 0.0
        %677 = vmatpush1.msra.mxu0 0.0
        %678 = vmatprep.subr.mxu0 0.0
        %679 = vmatpush1.msra.mxu0 0.0
        %680 = vmatprep.subr.mxu0 0.0
        %681 = vmatpush1.msra.mxu0 0.0
        %682 = vmatprep.subr.mxu0 0.0
        %683 = vmatpush1.msra.mxu0 0.0
        %684 = vmatprep.subr.mxu0 0.0
        %685 = vmatpush1.msra.mxu0 0.0
        %686 = vmatprep.subr.mxu0 0.0
        %687 = vmatpush1.msra.mxu0 0.0
        %688 = vmatprep.subr.mxu0 0.0
        %689 = vmatpush1.msra.mxu0 0.0
        %690 = vmatprep.subr.mxu0 0.0
        %691 = vmatpush1.msra.mxu0 0.0
        %692 = vmatprep.subr.mxu0 0.0
        %693 = vmatpush1.msra.mxu0 0.0
        %694 = vmatprep.subr.mxu0 0.0
        %695 = vmatpush1.msra.mxu0 0.0
        %696 = vmatprep.subr.mxu0 0.0
        %697 = vmatpush1.msra.mxu0 0.0
        %698 = vmatprep.subr.mxu0 0.0
        %699 = vmatpush1.msra.mxu0 0.0
        %700 = vmatprep.subr.mxu0 0.0
        %701 = vmatpush1.msra.mxu0 0.0
        %702 = vmatprep.mubr.f32.mxu0 0.0
        %703 = vmatmul.mubr.f32.gmra.mrb[0].mxu0 %v637
        %v704 = vpop.f32.mrb[0].mxu0
        %v705 = vadd.f32 0.0, %v704
        %v706 = vpop.f32.mrb[0].mxu0
        %v707 = vadd.f32 0.0, %v706
        %708 = vdwg.mxu0
        %709 = vmatprep.subr.mxu0 %v278
        %710 = vmatpush1.msra.mxu0 %v277
        %711 = vmatprep.subr.mxu0 %v282
        %712 = vmatpush1.msra.mxu0 %v281
        %713 = vmatprep.subr.mxu0 %v286
        %714 = vmatpush1.msra.mxu0 %v285
        %715 = vmatprep.subr.mxu0 %v290
        %716 = vmatpush1.msra.mxu0 %v289
        %717 = vmatprep.subr.mxu0 %v294
        %718 = vmatpush1.msra.mxu0 %v293
        %719 = vmatprep.subr.mxu0 %v298
        %720 = vmatpush1.msra.mxu0 %v297
        %721 = vmatprep.subr.mxu0 %v302
        %722 = vmatpush1.msra.mxu0 %v301
        %723 = vmatprep.subr.mxu0 %v306
        %724 = vmatpush1.msra.mxu0 %v305
        %725 = vmatprep.subr.mxu0 %v310
        %726 = vmatpush1.msra.mxu0 %v309
        %727 = vmatprep.subr.mxu0 %v314
        %728 = vmatpush1.msra.mxu0 %v313
        %729 = vmatprep.subr.mxu0 %v318
        %730 = vmatpush1.msra.mxu0 %v317
        %731 = vmatprep.subr.mxu0 %v322
        %732 = vmatpush1.msra.mxu0 %v321
        %733 = vmatprep.subr.mxu0 %v326
        %734 = vmatpush1.msra.mxu0 %v325
        %735 = vmatprep.subr.mxu0 %v330
        %736 = vmatpush1.msra.mxu0 %v329
        %737 = vmatprep.subr.mxu0 %v334
        %738 = vmatpush1.msra.mxu0 %v333
        %739 = vmatprep.subr.mxu0 %v338
        %740 = vmatpush1.msra.mxu0 %v337
        %741 = vmatprep.subr.mxu0 0.0
        %742 = vmatpush1.msra.mxu0 0.0
        %743 = vmatprep.subr.mxu0 0.0
        %744 = vmatpush1.msra.mxu0 0.0
        %745 = vmatprep.subr.mxu0 0.0
        %746 = vmatpush1.msra.mxu0 0.0
        %747 = vmatprep.subr.mxu0 0.0
        %748 = vmatpush1.msra.mxu0 0.0
        %749 = vmatprep.subr.mxu0 0.0
        %750 = vmatpush1.msra.mxu0 0.0
        %751 = vmatprep.subr.mxu0 0.0
        %752 = vmatpush1.msra.mxu0 0.0
        %753 = vmatprep.subr.mxu0 0.0
        %754 = vmatpush1.msra.mxu0 0.0
        %755 = vmatprep.subr.mxu0 0.0
        %756 = vmatpush1.msra.mxu0 0.0
        %757 = vmatprep.subr.mxu0 0.0
        %758 = vmatpush1.msra.mxu0 0.0
        %759 = vmatprep.subr.mxu0 0.0
        %760 = vmatpush1.msra.mxu0 0.0
        %761 = vmatprep.subr.mxu0 0.0
        %762 = vmatpush1.msra.mxu0 0.0
        %763 = vmatprep.subr.mxu0 0.0
        %764 = vmatpush1.msra.mxu0 0.0
        %765 = vmatprep.subr.mxu0 0.0
        %766 = vmatpush1.msra.mxu0 0.0
        %767 = vmatprep.subr.mxu0 0.0
        %768 = vmatpush1.msra.mxu0 0.0
        %769 = vmatprep.subr.mxu0 0.0
        %770 = vmatpush1.msra.mxu0 0.0
        %771 = vmatprep.subr.mxu0 0.0
        %772 = vmatpush1.msra.mxu0 0.0
        %773 = vmatprep.mubr.f32.mxu0 0.0
        %774 = vmatmul.mubr.f32.gmra.mrb[0].mxu0 %v637
        %v775 = vpop.f32.mrb[0].mxu0
        %v776 = vadd.f32 0.0, %v775
        %v777 = vpop.f32.mrb[0].mxu0
        %v778 = vadd.f32 0.0, %v777
        %779 = vdwg.mxu0
        %s780 = scalar_lea.vmem %s238, 6 [#allocation2]
        %v781 = vld [vmem:[%s780] sm:$0x3]
        %782 = vmatprep.subr.mxu0 %v276
        %783 = vmatpush1.msra.mxu0 %v275
        %784 = vmatprep.subr.mxu0 %v280
        %785 = vmatpush1.msra.mxu0 %v279
        %786 = vmatprep.subr.mxu0 %v284
        %787 = vmatpush1.msra.mxu0 %v283
        %788 = vmatprep.subr.mxu0 %v288
        %789 = vmatpush1.msra.mxu0 %v287
        %790 = vmatprep.subr.mxu0 %v292
        %791 = vmatpush1.msra.mxu0 %v291
        %792 = vmatprep.subr.mxu0 %v296
        %793 = vmatpush1.msra.mxu0 %v295
        %794 = vmatprep.subr.mxu0 %v300
        %795 = vmatpush1.msra.mxu0 %v299
        %796 = vmatprep.subr.mxu0 %v304
        %797 = vmatpush1.msra.mxu0 %v303
        %798 = vmatprep.subr.mxu0 %v308
        %799 = vmatpush1.msra.mxu0 %v307
        %800 = vmatprep.subr.mxu0 %v312
        %801 = vmatpush1.msra.mxu0 %v311
        %802 = vmatprep.subr.mxu0 %v316
        %803 = vmatpush1.msra.mxu0 %v315
        %804 = vmatprep.subr.mxu0 %v320
        %805 = vmatpush1.msra.mxu0 %v319
        %806 = vmatprep.subr.mxu0 %v324
        %807 = vmatpush1.msra.mxu0 %v323
        %808 = vmatprep.subr.mxu0 %v328
        %809 = vmatpush1.msra.mxu0 %v327
        %810 = vmatprep.subr.mxu0 %v332
        %811 = vmatpush1.msra.mxu0 %v331
        %812 = vmatprep.subr.mxu0 %v336
        %813 = vmatpush1.msra.mxu0 %v335
        %814 = vmatprep.subr.mxu0 0.0
        %815 = vmatpush1.msra.mxu0 0.0
        %816 = vmatprep.subr.mxu0 0.0
        %817 = vmatpush1.msra.mxu0 0.0
        %818 = vmatprep.subr.mxu0 0.0
        %819 = vmatpush1.msra.mxu0 0.0
        %820 = vmatprep.subr.mxu0 0.0
        %821 = vmatpush1.msra.mxu0 0.0
        %822 = vmatprep.subr.mxu0 0.0
        %823 = vmatpush1.msra.mxu0 0.0
        %824 = vmatprep.subr.mxu0 0.0
        %825 = vmatpush1.msra.mxu0 0.0
        %826 = vmatprep.subr.mxu0 0.0
        %827 = vmatpush1.msra.mxu0 0.0
        %828 = vmatprep.subr.mxu0 0.0
        %829 = vmatpush1.msra.mxu0 0.0
        %830 = vmatprep.subr.mxu0 0.0
        %831 = vmatpush1.msra.mxu0 0.0
        %832 = vmatprep.subr.mxu0 0.0
        %833 = vmatpush1.msra.mxu0 0.0
        %834 = vmatprep.subr.mxu0 0.0
        %835 = vmatpush1.msra.mxu0 0.0
        %836 = vmatprep.subr.mxu0 0.0
        %837 = vmatpush1.msra.mxu0 0.0
        %838 = vmatprep.subr.mxu0 0.0
        %839 = vmatpush1.msra.mxu0 0.0
        %840 = vmatprep.subr.mxu0 0.0
        %841 = vmatpush1.msra.mxu0 0.0
        %842 = vmatprep.subr.mxu0 0.0
        %843 = vmatpush1.msra.mxu0 0.0
        %844 = vmatprep.subr.mxu0 0.0
        %845 = vmatpush1.msra.mxu0 0.0
        %846 = vmatprep.mubr.f32.mxu0 0.0
        %847 = vmatmul.mubr.f32.gmra.mrb[0].mxu0 %v781
        %v848 = vpop.f32.mrb[0].mxu0
        %v849 = vadd.f32 0.0, %v848
        %v850 = vpop.f32.mrb[0].mxu0
        %v851 = vadd.f32 0.0, %v850
        %852 = vdwg.mxu0
        %853 = vmatprep.subr.mxu0 %v278
        %854 = vmatpush1.msra.mxu0 %v277
        %855 = vmatprep.subr.mxu0 %v282
        %856 = vmatpush1.msra.mxu0 %v281
        %857 = vmatprep.subr.mxu0 %v286
        %858 = vmatpush1.msra.mxu0 %v285
        %859 = vmatprep.subr.mxu0 %v290
        %860 = vmatpush1.msra.mxu0 %v289
        %861 = vmatprep.subr.mxu0 %v294
        %862 = vmatpush1.msra.mxu0 %v293
        %863 = vmatprep.subr.mxu0 %v298
        %864 = vmatpush1.msra.mxu0 %v297
        %865 = vmatprep.subr.mxu0 %v302
        %866 = vmatpush1.msra.mxu0 %v301
        %867 = vmatprep.subr.mxu0 %v306
        %868 = vmatpush1.msra.mxu0 %v305
        %869 = vmatprep.subr.mxu0 %v310
        %870 = vmatpush1.msra.mxu0 %v309
        %871 = vmatprep.subr.mxu0 %v314
        %872 = vmatpush1.msra.mxu0 %v313
        %873 = vmatprep.subr.mxu0 %v318
        %874 = vmatpush1.msra.mxu0 %v317
        %875 = vmatprep.subr.mxu0 %v322
        %876 = vmatpush1.msra.mxu0 %v321
        %877 = vmatprep.subr.mxu0 %v326
        %878 = vmatpush1.msra.mxu0 %v325
        %879 = vmatprep.subr.mxu0 %v330
        %880 = vmatpush1.msra.mxu0 %v329
        %881 = vmatprep.subr.mxu0 %v334
        %882 = vmatpush1.msra.mxu0 %v333
        %883 = vmatprep.subr.mxu0 %v338
        %884 = vmatpush1.msra.mxu0 %v337
        %885 = vmatprep.subr.mxu0 0.0
        %886 = vmatpush1.msra.mxu0 0.0
        %887 = vmatprep.subr.mxu0 0.0
        %888 = vmatpush1.msra.mxu0 0.0
        %889 = vmatprep.subr.mxu0 0.0
        %890 = vmatpush1.msra.mxu0 0.0
        %891 = vmatprep.subr.mxu0 0.0
        %892 = vmatpush1.msra.mxu0 0.0
        %893 = vmatprep.subr.mxu0 0.0
        %894 = vmatpush1.msra.mxu0 0.0
        %895 = vmatprep.subr.mxu0 0.0
        %896 = vmatpush1.msra.mxu0 0.0
        %897 = vmatprep.subr.mxu0 0.0
        %898 = vmatpush1.msra.mxu0 0.0
        %899 = vmatprep.subr.mxu0 0.0
        %900 = vmatpush1.msra.mxu0 0.0
        %901 = vmatprep.subr.mxu0 0.0
        %902 = vmatpush1.msra.mxu0 0.0
        %903 = vmatprep.subr.mxu0 0.0
        %904 = vmatpush1.msra.mxu0 0.0
        %905 = vmatprep.subr.mxu0 0.0
        %906 = vmatpush1.msra.mxu0 0.0
        %907 = vmatprep.subr.mxu0 0.0
        %908 = vmatpush1.msra.mxu0 0.0
        %909 = vmatprep.subr.mxu0 0.0
        %910 = vmatpush1.msra.mxu0 0.0
        %911 = vmatprep.subr.mxu0 0.0
        %912 = vmatpush1.msra.mxu0 0.0
        %913 = vmatprep.subr.mxu0 0.0
        %914 = vmatpush1.msra.mxu0 0.0
        %915 = vmatprep.subr.mxu0 0.0
        %916 = vmatpush1.msra.mxu0 0.0
        %917 = vmatprep.mubr.f32.mxu0 0.0
        %918 = vmatmul.mubr.f32.gmra.mrb[0].mxu0 %v781
        %v919 = vpop.f32.mrb[0].mxu0
        %v920 = vadd.f32 0.0, %v919
        %v921 = vpop.f32.mrb[0].mxu0
        %v922 = vadd.f32 0.0, %v921
        %923 = vdwg.mxu0
        %v924 = vlaneseq
        %v925 = vshrl.u32 %v924, 7
        %v926 = vsub.s32 0, %v925
        %v927 = vrot.slane %v339, %v926
        %v928 = vlaneseq
        %v929 = vshrl.u32 %v928, 7
        %v930 = vsub.s32 0, %v929
        %v931 = vrot.slane %v340, %v930
        %v932 = vlaneseq
        %v933 = vshrl.u32 %v932, 7
        %v934 = vsub.s32 0, %v933
        %v935 = vrot.slane %v341, %v934
        %v936 = vlaneseq
        %v937 = vshrl.u32 %v936, 7
        %v938 = vsub.s32 0, %v937
        %v939 = vrot.slane %v342, %v938
        %v940 = vmul.f32 %v927, %v417
        %v941 = vmul.f32 %v931, %v419
        %v942 = vmul.f32 %v935, %v488
        %v943 = vmul.f32 %v939, %v490
        %v946 = vlaneseq
        %v947 = vshrl.u32 %v946, 7
        %v948 = vsub.s32 0, %v947
        %v949 = vrot.slane %v347, %v948
        %v950 = vlaneseq
        %v951 = vshrl.u32 %v950, 7
        %v952 = vsub.s32 4, %v951
        %v953 = vrot.slane %v347, %v952
        %v954 = vlaneseq
        %v955 = vshrl.u32 %v954, 7
        %v956 = vsub.s32 0, %v955
        %v957 = vrot.slane %v348, %v956
        %v958 = vlaneseq
        %v959 = vshrl.u32 %v958, 7
        %v960 = vsub.s32 4, %v959
        %v961 = vrot.slane %v348, %v960
        %v966 = vlaneseq
        %v967 = vshrl.u32 %v966, 7
        %v968 = vsub.s32 0, %v967
        %v969 = vrot.slane %v949, %v968
        %v970 = vlaneseq
        %v971 = vshrl.u32 %v970, 7
        %v972 = vsub.s32 0, %v971
        %v973 = vrot.slane %v953, %v972
        %v974 = vlaneseq
        %v975 = vshrl.u32 %v974, 7
        %v976 = vsub.s32 0, %v975
        %v977 = vrot.slane %v957, %v976
        %v978 = vlaneseq
        %v979 = vshrl.u32 %v978, 7
        %v980 = vsub.s32 0, %v979
        %v981 = vrot.slane %v961, %v980
        %v982 = vadd.f32 %v969, %v940
        %v983 = vadd.f32 %v973, %v941
        %v984 = vadd.f32 %v977, %v942
        %v985 = vadd.f32 %v981, %v943
        %v986 = vlaneseq
        %v987 = vshrl.u32 %v986, 7
        %v988 = vsub.s32 1, %v987
        %v989 = vrot.slane %v339, %v988
        %v990 = vlaneseq
        %v991 = vshrl.u32 %v990, 7
        %v992 = vsub.s32 1, %v991
        %v993 = vrot.slane %v340, %v992
        %v994 = vlaneseq
        %v995 = vshrl.u32 %v994, 7
        %v996 = vsub.s32 1, %v995
        %v997 = vrot.slane %v341, %v996
        %v998 = vlaneseq
        %v999 = vshrl.u32 %v998, 7
        %v1000 = vsub.s32 1, %v999
        %v1001 = vrot.slane %v342, %v1000
        %v1002 = vmul.f32 %v989, %v561
        %v1003 = vmul.f32 %v993, %v563
        %v1004 = vmul.f32 %v997, %v632
        %v1005 = vmul.f32 %v1001, %v634
        %v1006 = vadd.f32 %v982, %v1002
        %v1007 = vadd.f32 %v983, %v1003
        %v1008 = vadd.f32 %v984, %v1004
        %v1009 = vadd.f32 %v985, %v1005
        %v1010 = vlaneseq
        %v1011 = vshrl.u32 %v1010, 7
        %v1012 = vsub.s32 2, %v1011
        %v1013 = vrot.slane %v339, %v1012
        %v1014 = vlaneseq
        %v1015 = vshrl.u32 %v1014, 7
        %v1016 = vsub.s32 2, %v1015
        %v1017 = vrot.slane %v340, %v1016
        %v1018 = vlaneseq
        %v1019 = vshrl.u32 %v1018, 7
        %v1020 = vsub.s32 2, %v1019
        %v1021 = vrot.slane %v341, %v1020
        %v1022 = vlaneseq
        %v1023 = vshrl.u32 %v1022, 7
        %v1024 = vsub.s32 2, %v1023
        %v1025 = vrot.slane %v342, %v1024
        %v1026 = vmul.f32 %v1013, %v705
        %v1027 = vmul.f32 %v1017, %v707
        %v1028 = vmul.f32 %v1021, %v776
        %v1029 = vmul.f32 %v1025, %v778
        %v1030 = vadd.f32 %v1006, %v1026
        %v1031 = vadd.f32 %v1007, %v1027
        %v1032 = vadd.f32 %v1008, %v1028
        %v1033 = vadd.f32 %v1009, %v1029
        %v1034 = vlaneseq
        %v1035 = vshrl.u32 %v1034, 7
        %v1036 = vsub.s32 3, %v1035
        %v1037 = vrot.slane %v339, %v1036
        %v1038 = vlaneseq
        %v1039 = vshrl.u32 %v1038, 7
        %v1040 = vsub.s32 3, %v1039
        %v1041 = vrot.slane %v340, %v1040
        %v1042 = vlaneseq
        %v1043 = vshrl.u32 %v1042, 7
        %v1044 = vsub.s32 3, %v1043
        %v1045 = vrot.slane %v341, %v1044
        %v1046 = vlaneseq
        %v1047 = vshrl.u32 %v1046, 7
        %v1048 = vsub.s32 3, %v1047
        %v1049 = vrot.slane %v342, %v1048
        %v1050 = vmul.f32 %v1037, %v849
        %v1051 = vmul.f32 %v1041, %v851
        %v1052 = vmul.f32 %v1045, %v920
        %v1053 = vmul.f32 %v1049, %v922
        %v1054 = vadd.f32 %v1030, %v1050
        %v1055 = vadd.f32 %v1031, %v1051
        %v1056 = vadd.f32 %v1032, %v1052
        %v1057 = vadd.f32 %v1033, %v1053
        %v1058 = vmax.f32 %v1054, 0.0
        %v1059 = vmax.f32 %v1055, 0.0
        %v1060 = vmax.f32 %v1056, 0.0
        %v1061 = vmax.f32 %v1057, 0.0
        %v1066 = vcombine.low %v1058, %v1059
        %v1067 = vcombine.low %v1060, %v1061
        %v1069 = vunpack.c.l.s4 1983009808
        %v1070 = vunpack.c.0.s8 %v1069
        %v1071 = vlaneseq
        %v1072 = vshrl.u32 %v1071, 7
        %v1073 = vsub.s32 %v1070, %v1072
        %v1074 = vrot.slane %v1066, %v1073
        %v1076 = vunpack.c.l.s4 1983009808
        %v1077 = vunpack.c.0.s8 %v1076
        %v1078 = vlaneseq
        %v1079 = vshrl.u32 %v1078, 7
        %v1080 = vsub.s32 %v1077, %v1079
        %v1081 = vrot.slane %v1067, %v1080
        %v1082 = vcombine.low %v1074, %v1081
        %1084 = vst [vmem:[%s274] sm:$0xff] %v1082
        %v1085 = vlaneseq
        %v1086 = vshrl.u32 %v1085, 7
        %v1087 = vsub.s32 4, %v1086
        %v1088 = vrot.slane %v339, %v1087
        %v1089 = vlaneseq
        %v1090 = vshrl.u32 %v1089, 7
        %v1091 = vsub.s32 4, %v1090
        %v1092 = vrot.slane %v340, %v1091
        %v1093 = vlaneseq
        %v1094 = vshrl.u32 %v1093, 7
        %v1095 = vsub.s32 4, %v1094
        %v1096 = vrot.slane %v341, %v1095
        %v1097 = vlaneseq
        %v1098 = vshrl.u32 %v1097, 7
        %v1099 = vsub.s32 4, %v1098
        %v1100 = vrot.slane %v342, %v1099
        %v1101 = vmul.f32 %v1088, %v417
        %v1102 = vmul.f32 %v1092, %v419
        %v1103 = vmul.f32 %v1096, %v488
        %v1104 = vmul.f32 %v1100, %v490
        %v1105 = vlaneseq
        %v1106 = vshrl.u32 %v1105, 7
        %v1107 = vsub.s32 1, %v1106
        %v1108 = vrot.slane %v347, %v1107
        %v1109 = vlaneseq
        %v1110 = vshrl.u32 %v1109, 7
        %v1111 = vsub.s32 5, %v1110
        %v1112 = vrot.slane %v347, %v1111
        %v1113 = vlaneseq
        %v1114 = vshrl.u32 %v1113, 7
        %v1115 = vsub.s32 1, %v1114
        %v1116 = vrot.slane %v348, %v1115
        %v1117 = vlaneseq
        %v1118 = vshrl.u32 %v1117, 7
        %v1119 = vsub.s32 5, %v1118
        %v1120 = vrot.slane %v348, %v1119
        %v1125 = vlaneseq
        %v1126 = vshrl.u32 %v1125, 7
        %v1127 = vsub.s32 1, %v1126
        %v1128 = vrot.slane %v1108, %v1127
        %v1129 = vlaneseq
        %v1130 = vshrl.u32 %v1129, 7
        %v1131 = vsub.s32 1, %v1130
        %v1132 = vrot.slane %v1112, %v1131
        %v1133 = vlaneseq
        %v1134 = vshrl.u32 %v1133, 7
        %v1135 = vsub.s32 1, %v1134
        %v1136 = vrot.slane %v1116, %v1135
        %v1137 = vlaneseq
        %v1138 = vshrl.u32 %v1137, 7
        %v1139 = vsub.s32 1, %v1138
        %v1140 = vrot.slane %v1120, %v1139
        %v1141 = vadd.f32 %v1128, %v1101
        %v1142 = vadd.f32 %v1132, %v1102
        %v1143 = vadd.f32 %v1136, %v1103
        %v1144 = vadd.f32 %v1140, %v1104
        %v1145 = vlaneseq
        %v1146 = vshrl.u32 %v1145, 7
        %v1147 = vsub.s32 5, %v1146
        %v1148 = vrot.slane %v339, %v1147
        %v1149 = vlaneseq
        %v1150 = vshrl.u32 %v1149, 7
        %v1151 = vsub.s32 5, %v1150
        %v1152 = vrot.slane %v340, %v1151
        %v1153 = vlaneseq
        %v1154 = vshrl.u32 %v1153, 7
        %v1155 = vsub.s32 5, %v1154
        %v1156 = vrot.slane %v341, %v1155
        %v1157 = vlaneseq
        %v1158 = vshrl.u32 %v1157, 7
        %v1159 = vsub.s32 5, %v1158
        %v1160 = vrot.slane %v342, %v1159
        %v1161 = vmul.f32 %v1148, %v561
        %v1162 = vmul.f32 %v1152, %v563
        %v1163 = vmul.f32 %v1156, %v632
        %v1164 = vmul.f32 %v1160, %v634
        %v1165 = vadd.f32 %v1141, %v1161
        %v1166 = vadd.f32 %v1142, %v1162
        %v1167 = vadd.f32 %v1143, %v1163
        %v1168 = vadd.f32 %v1144, %v1164
        %v1169 = vlaneseq
        %v1170 = vshrl.u32 %v1169, 7
        %v1171 = vsub.s32 6, %v1170
        %v1172 = vrot.slane %v339, %v1171
        %v1173 = vlaneseq
        %v1174 = vshrl.u32 %v1173, 7
        %v1175 = vsub.s32 6, %v1174
        %v1176 = vrot.slane %v340, %v1175
        %v1177 = vlaneseq
        %v1178 = vshrl.u32 %v1177, 7
        %v1179 = vsub.s32 6, %v1178
        %v1180 = vrot.slane %v341, %v1179
        %v1181 = vlaneseq
        %v1182 = vshrl.u32 %v1181, 7
        %v1183 = vsub.s32 6, %v1182
        %v1184 = vrot.slane %v342, %v1183
        %v1185 = vmul.f32 %v1172, %v705
        %v1186 = vmul.f32 %v1176, %v707
        %v1187 = vmul.f32 %v1180, %v776
        %v1188 = vmul.f32 %v1184, %v778
        %v1189 = vadd.f32 %v1165, %v1185
        %v1190 = vadd.f32 %v1166, %v1186
        %v1191 = vadd.f32 %v1167, %v1187
        %v1192 = vadd.f32 %v1168, %v1188
        %v1193 = vlaneseq
        %v1194 = vshrl.u32 %v1193, 7
        %v1195 = vsub.s32 7, %v1194
        %v1196 = vrot.slane %v339, %v1195
        %v1197 = vlaneseq
        %v1198 = vshrl.u32 %v1197, 7
        %v1199 = vsub.s32 7, %v1198
        %v1200 = vrot.slane %v340, %v1199
        %v1201 = vlaneseq
        %v1202 = vshrl.u32 %v1201, 7
        %v1203 = vsub.s32 7, %v1202
        %v1204 = vrot.slane %v341, %v1203
        %v1205 = vlaneseq
        %v1206 = vshrl.u32 %v1205, 7
        %v1207 = vsub.s32 7, %v1206
        %v1208 = vrot.slane %v342, %v1207
        %v1209 = vmul.f32 %v1196, %v849
        %v1210 = vmul.f32 %v1200, %v851
        %v1211 = vmul.f32 %v1204, %v920
        %v1212 = vmul.f32 %v1208, %v922
        %v1213 = vadd.f32 %v1189, %v1209
        %v1214 = vadd.f32 %v1190, %v1210
        %v1215 = vadd.f32 %v1191, %v1211
        %v1216 = vadd.f32 %v1192, %v1212
        %v1217 = vmax.f32 %v1213, 0.0
        %v1218 = vmax.f32 %v1214, 0.0
        %v1219 = vmax.f32 %v1215, 0.0
        %v1220 = vmax.f32 %v1216, 0.0
        %v1225 = vcombine.low %v1217, %v1218
        %v1226 = vcombine.low %v1219, %v1220
        %v1228 = vunpack.c.l.s4 1983009808
        %v1229 = vunpack.c.0.s8 %v1228
        %v1230 = vlaneseq
        %v1231 = vshrl.u32 %v1230, 7
        %v1232 = vsub.s32 %v1229, %v1231
        %v1233 = vrot.slane %v1225, %v1232
        %v1235 = vunpack.c.l.s4 1983009808
        %v1236 = vunpack.c.0.s8 %v1235
        %v1237 = vlaneseq
        %v1238 = vshrl.u32 %v1237, 7
        %v1239 = vsub.s32 %v1236, %v1238
        %v1240 = vrot.slane %v1226, %v1239
        %v1241 = vcombine.low %v1233, %v1240
        %s1243 = scalar_lea.vmem %s274, 8 [#allocation10]
        %1244 = vst [vmem:[%s1243] sm:$0xff] %v1241
        %v1245 = vlaneseq
        %v1246 = vshrl.u32 %v1245, 7
        %v1247 = vsub.s32 0, %v1246
        %v1248 = vrot.slane %v343, %v1247
        %v1249 = vlaneseq
        %v1250 = vshrl.u32 %v1249, 7
        %v1251 = vsub.s32 0, %v1250
        %v1252 = vrot.slane %v344, %v1251
        %v1253 = vlaneseq
        %v1254 = vshrl.u32 %v1253, 7
        %v1255 = vsub.s32 0, %v1254
        %v1256 = vrot.slane %v345, %v1255
        %v1257 = vlaneseq
        %v1258 = vshrl.u32 %v1257, 7
        %v1259 = vsub.s32 0, %v1258
        %v1260 = vrot.slane %v346, %v1259
        %v1261 = vmul.f32 %v1248, %v417
        %v1262 = vmul.f32 %v1252, %v419
        %v1263 = vmul.f32 %v1256, %v488
        %v1264 = vmul.f32 %v1260, %v490
        %v1265 = vlaneseq
        %v1266 = vshrl.u32 %v1265, 7
        %v1267 = vsub.s32 2, %v1266
        %v1268 = vrot.slane %v347, %v1267
        %v1269 = vlaneseq
        %v1270 = vshrl.u32 %v1269, 7
        %v1271 = vsub.s32 6, %v1270
        %v1272 = vrot.slane %v347, %v1271
        %v1273 = vlaneseq
        %v1274 = vshrl.u32 %v1273, 7
        %v1275 = vsub.s32 2, %v1274
        %v1276 = vrot.slane %v348, %v1275
        %v1277 = vlaneseq
        %v1278 = vshrl.u32 %v1277, 7
        %v1279 = vsub.s32 6, %v1278
        %v1280 = vrot.slane %v348, %v1279
        %v1285 = vlaneseq
        %v1286 = vshrl.u32 %v1285, 7
        %v1287 = vsub.s32 2, %v1286
        %v1288 = vrot.slane %v1268, %v1287
        %v1289 = vlaneseq
        %v1290 = vshrl.u32 %v1289, 7
        %v1291 = vsub.s32 2, %v1290
        %v1292 = vrot.slane %v1272, %v1291
        %v1293 = vlaneseq
        %v1294 = vshrl.u32 %v1293, 7
        %v1295 = vsub.s32 2, %v1294
        %v1296 = vrot.slane %v1276, %v1295
        %v1297 = vlaneseq
        %v1298 = vshrl.u32 %v1297, 7
        %v1299 = vsub.s32 2, %v1298
        %v1300 = vrot.slane %v1280, %v1299
        %v1301 = vadd.f32 %v1288, %v1261
        %v1302 = vadd.f32 %v1292, %v1262
        %v1303 = vadd.f32 %v1296, %v1263
        %v1304 = vadd.f32 %v1300, %v1264
        %v1305 = vlaneseq
        %v1306 = vshrl.u32 %v1305, 7
        %v1307 = vsub.s32 1, %v1306
        %v1308 = vrot.slane %v343, %v1307
        %v1309 = vlaneseq
        %v1310 = vshrl.u32 %v1309, 7
        %v1311 = vsub.s32 1, %v1310
        %v1312 = vrot.slane %v344, %v1311
        %v1313 = vlaneseq
        %v1314 = vshrl.u32 %v1313, 7
        %v1315 = vsub.s32 1, %v1314
        %v1316 = vrot.slane %v345, %v1315
        %v1317 = vlaneseq
        %v1318 = vshrl.u32 %v1317, 7
        %v1319 = vsub.s32 1, %v1318
        %v1320 = vrot.slane %v346, %v1319
        %v1321 = vmul.f32 %v1308, %v561
        %v1322 = vmul.f32 %v1312, %v563
        %v1323 = vmul.f32 %v1316, %v632
        %v1324 = vmul.f32 %v1320, %v634
        %v1325 = vadd.f32 %v1301, %v1321
        %v1326 = vadd.f32 %v1302, %v1322
        %v1327 = vadd.f32 %v1303, %v1323
        %v1328 = vadd.f32 %v1304, %v1324
        %v1329 = vlaneseq
        %v1330 = vshrl.u32 %v1329, 7
        %v1331 = vsub.s32 2, %v1330
        %v1332 = vrot.slane %v343, %v1331
        %v1333 = vlaneseq
        %v1334 = vshrl.u32 %v1333, 7
        %v1335 = vsub.s32 2, %v1334
        %v1336 = vrot.slane %v344, %v1335
        %v1337 = vlaneseq
        %v1338 = vshrl.u32 %v1337, 7
        %v1339 = vsub.s32 2, %v1338
        %v1340 = vrot.slane %v345, %v1339
        %v1341 = vlaneseq
        %v1342 = vshrl.u32 %v1341, 7
        %v1343 = vsub.s32 2, %v1342
        %v1344 = vrot.slane %v346, %v1343
        %v1345 = vmul.f32 %v1332, %v705
        %v1346 = vmul.f32 %v1336, %v707
        %v1347 = vmul.f32 %v1340, %v776
        %v1348 = vmul.f32 %v1344, %v778
        %v1349 = vadd.f32 %v1325, %v1345
        %v1350 = vadd.f32 %v1326, %v1346
        %v1351 = vadd.f32 %v1327, %v1347
        %v1352 = vadd.f32 %v1328, %v1348
        %v1353 = vlaneseq
        %v1354 = vshrl.u32 %v1353, 7
        %v1355 = vsub.s32 3, %v1354
        %v1356 = vrot.slane %v343, %v1355
        %v1357 = vlaneseq
        %v1358 = vshrl.u32 %v1357, 7
        %v1359 = vsub.s32 3, %v1358
        %v1360 = vrot.slane %v344, %v1359
        %v1361 = vlaneseq
        %v1362 = vshrl.u32 %v1361, 7
        %v1363 = vsub.s32 3, %v1362
        %v1364 = vrot.slane %v345, %v1363
        %v1365 = vlaneseq
        %v1366 = vshrl.u32 %v1365, 7
        %v1367 = vsub.s32 3, %v1366
        %v1368 = vrot.slane %v346, %v1367
        %v1369 = vmul.f32 %v1356, %v849
        %v1370 = vmul.f32 %v1360, %v851
        %v1371 = vmul.f32 %v1364, %v920
        %v1372 = vmul.f32 %v1368, %v922
        %v1373 = vadd.f32 %v1349, %v1369
        %v1374 = vadd.f32 %v1350, %v1370
        %v1375 = vadd.f32 %v1351, %v1371
        %v1376 = vadd.f32 %v1352, %v1372
        %v1377 = vmax.f32 %v1373, 0.0
        %v1378 = vmax.f32 %v1374, 0.0
        %v1379 = vmax.f32 %v1375, 0.0
        %v1380 = vmax.f32 %v1376, 0.0
        %v1385 = vcombine.low %v1377, %v1378
        %v1386 = vcombine.low %v1379, %v1380
        %v1388 = vunpack.c.l.s4 1983009808
        %v1389 = vunpack.c.0.s8 %v1388
        %v1390 = vlaneseq
        %v1391 = vshrl.u32 %v1390, 7
        %v1392 = vsub.s32 %v1389, %v1391
        %v1393 = vrot.slane %v1385, %v1392
        %v1395 = vunpack.c.l.s4 1983009808
        %v1396 = vunpack.c.0.s8 %v1395
        %v1397 = vlaneseq
        %v1398 = vshrl.u32 %v1397, 7
        %v1399 = vsub.s32 %v1396, %v1398
        %v1400 = vrot.slane %v1386, %v1399
        %v1401 = vcombine.low %v1393, %v1400
        %s1403 = scalar_lea.vmem %s274, 16 [#allocation10]
        %1404 = vst [vmem:[%s1403] sm:$0xff] %v1401
        %v1405 = vlaneseq
        %v1406 = vshrl.u32 %v1405, 7
        %v1407 = vsub.s32 4, %v1406
        %v1408 = vrot.slane %v343, %v1407
        %v1409 = vlaneseq
        %v1410 = vshrl.u32 %v1409, 7
        %v1411 = vsub.s32 4, %v1410
        %v1412 = vrot.slane %v344, %v1411
        %v1413 = vlaneseq
        %v1414 = vshrl.u32 %v1413, 7
        %v1415 = vsub.s32 4, %v1414
        %v1416 = vrot.slane %v345, %v1415
        %v1417 = vlaneseq
        %v1418 = vshrl.u32 %v1417, 7
        %v1419 = vsub.s32 4, %v1418
        %v1420 = vrot.slane %v346, %v1419
        %v1421 = vmul.f32 %v1408, %v417
        %v1422 = vmul.f32 %v1412, %v419
        %v1423 = vmul.f32 %v1416, %v488
        %v1424 = vmul.f32 %v1420, %v490
        %v1425 = vlaneseq
        %v1426 = vshrl.u32 %v1425, 7
        %v1427 = vsub.s32 3, %v1426
        %v1428 = vrot.slane %v347, %v1427
        %v1429 = vlaneseq
        %v1430 = vshrl.u32 %v1429, 7
        %v1431 = vsub.s32 7, %v1430
        %v1432 = vrot.slane %v347, %v1431
        %v1433 = vlaneseq
        %v1434 = vshrl.u32 %v1433, 7
        %v1435 = vsub.s32 3, %v1434
        %v1436 = vrot.slane %v348, %v1435
        %v1437 = vlaneseq
        %v1438 = vshrl.u32 %v1437, 7
        %v1439 = vsub.s32 7, %v1438
        %v1440 = vrot.slane %v348, %v1439
        %v1445 = vlaneseq
        %v1446 = vshrl.u32 %v1445, 7
        %v1447 = vsub.s32 3, %v1446
        %v1448 = vrot.slane %v1428, %v1447
        %v1449 = vlaneseq
        %v1450 = vshrl.u32 %v1449, 7
        %v1451 = vsub.s32 3, %v1450
        %v1452 = vrot.slane %v1432, %v1451
        %v1453 = vlaneseq
        %v1454 = vshrl.u32 %v1453, 7
        %v1455 = vsub.s32 3, %v1454
        %v1456 = vrot.slane %v1436, %v1455
        %v1457 = vlaneseq
        %v1458 = vshrl.u32 %v1457, 7
        %v1459 = vsub.s32 3, %v1458
        %v1460 = vrot.slane %v1440, %v1459
        %v1461 = vadd.f32 %v1448, %v1421
        %v1462 = vadd.f32 %v1452, %v1422
        %v1463 = vadd.f32 %v1456, %v1423
        %v1464 = vadd.f32 %v1460, %v1424
        %v1465 = vlaneseq
        %v1466 = vshrl.u32 %v1465, 7
        %v1467 = vsub.s32 5, %v1466
        %v1468 = vrot.slane %v343, %v1467
        %v1469 = vlaneseq
        %v1470 = vshrl.u32 %v1469, 7
        %v1471 = vsub.s32 5, %v1470
        %v1472 = vrot.slane %v344, %v1471
        %v1473 = vlaneseq
        %v1474 = vshrl.u32 %v1473, 7
        %v1475 = vsub.s32 5, %v1474
        %v1476 = vrot.slane %v345, %v1475
        %v1477 = vlaneseq
        %v1478 = vshrl.u32 %v1477, 7
        %v1479 = vsub.s32 5, %v1478
        %v1480 = vrot.slane %v346, %v1479
        %v1481 = vmul.f32 %v1468, %v561
        %v1482 = vmul.f32 %v1472, %v563
        %v1483 = vmul.f32 %v1476, %v632
        %v1484 = vmul.f32 %v1480, %v634
        %v1485 = vadd.f32 %v1461, %v1481
        %v1486 = vadd.f32 %v1462, %v1482
        %v1487 = vadd.f32 %v1463, %v1483
        %v1488 = vadd.f32 %v1464, %v1484
        %v1489 = vlaneseq
        %v1490 = vshrl.u32 %v1489, 7
        %v1491 = vsub.s32 6, %v1490
        %v1492 = vrot.slane %v343, %v1491
        %v1493 = vlaneseq
        %v1494 = vshrl.u32 %v1493, 7
        %v1495 = vsub.s32 6, %v1494
        %v1496 = vrot.slane %v344, %v1495
        %v1497 = vlaneseq
        %v1498 = vshrl.u32 %v1497, 7
        %v1499 = vsub.s32 6, %v1498
        %v1500 = vrot.slane %v345, %v1499
        %v1501 = vlaneseq
        %v1502 = vshrl.u32 %v1501, 7
        %v1503 = vsub.s32 6, %v1502
        %v1504 = vrot.slane %v346, %v1503
        %v1505 = vmul.f32 %v1492, %v705
        %v1506 = vmul.f32 %v1496, %v707
        %v1507 = vmul.f32 %v1500, %v776
        %v1508 = vmul.f32 %v1504, %v778
        %v1509 = vadd.f32 %v1485, %v1505
        %v1510 = vadd.f32 %v1486, %v1506
        %v1511 = vadd.f32 %v1487, %v1507
        %v1512 = vadd.f32 %v1488, %v1508
        %v1513 = vlaneseq
        %v1514 = vshrl.u32 %v1513, 7
        %v1515 = vsub.s32 7, %v1514
        %v1516 = vrot.slane %v343, %v1515
        %v1517 = vlaneseq
        %v1518 = vshrl.u32 %v1517, 7
        %v1519 = vsub.s32 7, %v1518
        %v1520 = vrot.slane %v344, %v1519
        %v1521 = vlaneseq
        %v1522 = vshrl.u32 %v1521, 7
        %v1523 = vsub.s32 7, %v1522
        %v1524 = vrot.slane %v345, %v1523
        %v1525 = vlaneseq
        %v1526 = vshrl.u32 %v1525, 7
        %v1527 = vsub.s32 7, %v1526
        %v1528 = vrot.slane %v346, %v1527
        %v1529 = vmul.f32 %v1516, %v849
        %v1530 = vmul.f32 %v1520, %v851
        %v1531 = vmul.f32 %v1524, %v920
        %v1532 = vmul.f32 %v1528, %v922
        %v1533 = vadd.f32 %v1509, %v1529
        %v1534 = vadd.f32 %v1510, %v1530
        %v1535 = vadd.f32 %v1511, %v1531
        %v1536 = vadd.f32 %v1512, %v1532
        %v1537 = vmax.f32 %v1533, 0.0
        %v1538 = vmax.f32 %v1534, 0.0
        %v1539 = vmax.f32 %v1535, 0.0
        %v1540 = vmax.f32 %v1536, 0.0
        %v1545 = vcombine.low %v1537, %v1538
        %v1546 = vcombine.low %v1539, %v1540
        %v1548 = vunpack.c.l.s4 1983009808
        %v1549 = vunpack.c.0.s8 %v1548
        %v1550 = vlaneseq
        %v1551 = vshrl.u32 %v1550, 7
        %v1552 = vsub.s32 %v1549, %v1551
        %v1553 = vrot.slane %v1545, %v1552
        %v1555 = vunpack.c.l.s4 1983009808
        %v1556 = vunpack.c.0.s8 %v1555
        %v1557 = vlaneseq
        %v1558 = vshrl.u32 %v1557, 7
        %v1559 = vsub.s32 %v1556, %v1558
        %v1560 = vrot.slane %v1546, %v1559
        %v1561 = vcombine.low %v1553, %v1560
        %s1563 = scalar_lea.vmem %s274, 24 [#allocation10]
        %1564 = vst [vmem:[%s1563] sm:$0xff] %v1561
        %s1565 = sand.u32 %s136, 1
        %s1566 = scalar_lea.sflag [#allocation4], %s1565
        %s1567 = sand.u32 %s136, 1
        %s1568 = smul.addr %s1567, 32
        %s1569 = scalar_lea.vmem [#allocation10], %s1568
        // Predicated region
        $region53: #{tpu_custom_call.1} parent=35 // pred_check
          %p1570 = pneg %p146
        $region54: #{tpu_custom_call.1} parent=35 // pred_check_branch
          %1572 = sbr.rel (%p1570) target = $region56
        $region55: #{tpu_custom_call.1} parent=35 // pred_region
          %s1574 = ssub.s32 512, 512
          %1575 = vsyncadd %s1566, %s1574
          %s1576 = smul.addr %s28, 4
          %s1577 = smul.addr %s27, 16
          %s1578 = sadd.s32 %s1576, %s1577
          %s1579 = smul.addr %s1578, 32
          %s1580 = scalar_lea.hbm %s4, %s1579
          %s1581 = sshll.u32 %s1569, 4
          %s1582 = int_to_ptr.vmem [resolvable:$true] %s1581
          %1587 = dma.vmem_to_hbm [thread:$0]  %s1582, 512, %s1580, %s1566, 128, 128, 8
        $region56: #{tpu_custom_call.1} parent=35 // pred_fallthru
          _
      $region36: #{tpu_custom_call.1} parent=5 // pred_fallthru
        _
      %p1588 = scmp.le.s32.totalorder 2, %s18
      // Predicated region
      $region57: #{tpu_custom_call.1} parent=5 // pred_check
        %p1589 = pneg %p1588
      $region58: #{tpu_custom_call.1} parent=5 // pred_check_branch
        %1591 = sbr.rel (%p1589) target = $region60
      $region59: #{tpu_custom_call.1} parent=5 // pred_region
        %s1592 = ssub.s32 %s18, 2
        // Predicated region
        $region61: #{tpu_custom_call.1} parent=59 // pred_check
          %p1593 = pneg %p152
        $region62: #{tpu_custom_call.1} parent=59 // pred_check_branch
          %1595 = sbr.rel (%p1593) target = $region64
        $region63: #{tpu_custom_call.1} parent=59 // pred_region
          %s1596 = sand.u32 %s137, 1
          %s1597 = scalar_lea.sflag [#allocation4], %s1596
          %s1598 = sand.u32 %s137, 1
          %s1599 = smul.addr %s1598, 32
          %s1600 = scalar_lea.vmem [#allocation10], %s1599
          %1601 = dma.done %s1597, 512
        $region64: #{tpu_custom_call.1} parent=59 // pred_fallthru
          _
      $region60: #{tpu_custom_call.1} parent=5 // pred_fallthru
        _
    $region6: #{tpu_custom_call.1} parent=1 // loop_footer
      %s22 = sadd.s32 1, %s18
    $region7: #{tpu_custom_call.1} parent=1 // loop_footer_branch
      %17 = sbr.rel target = $region3
    $region8: #{tpu_custom_call.1} parent=1 // loop_exit
      _
    %1602 = vsyncpa [#allocation3], 1
    %s1603 = scalar_lea.sflag [#allocation3], 1
    %1604 = vsyncpa %s1603, 1
    %1605 = vsyncpa [#allocation6], 1
    %1606 = vsyncpa [#allocation9], 1
    %1607 = vsyncpa [#allocation4], 1
    %s1608 = scalar_lea.sflag [#allocation4], 1
    %1609 = vsyncpa %s1608, 1

</llo_original>
